<compile_context>
chip_gen: v7x
topology: tpu7x:2x2x1
jax: 0.10.0
libtpu: 0.0.40
codegen_flags: <defaults>
</compile_context>

<pallas_src>
import functools

import jax
import jax.numpy as jnp
import numpy as np
from jax.experimental import pallas as pl
from jax.experimental.pallas import tpu as pltpu


# -------------------- fused expand + depthwise + project kernel ---------------
def _fused_bottleneck_kernel(x_ref, w1_ref, wdw_ref, w2_ref, o_ref, *, th, W, Wpp):
    """One (batch image, output-row-band) step.

    x_ref  : (1, Hp, Wpp, cin)  reflect-padded, width-aligned input image
    w1_ref : (cin, chid)        1x1 expand weight      (resident)
    wdw_ref: (3, 3, chid)       depthwise 3x3 weight   (resident)
    w2_ref : (chid, coup)       1x1 projection weight  (resident)
    o_ref  : (1, th, W, coup)   output row band
    """
    r = pl.program_id(1)
    row0 = pl.multiple_of(r * th, th)          # band start (+ halo handled below)

    # ---- 1x1 expand + ReLU6 on the band (+1 halo row top/bottom) ------------
    xb = x_ref[0, pl.ds(row0, th + 2), :, :]   # [th+2, Wpp, cin]
    cin = xb.shape[-1]
    chid = w1_ref.shape[1]
    # Wpp % 8 == 0 -> this reshape is sublane-tile aligned (no relayout copy).
    h = jnp.dot(xb.reshape((th + 2) * Wpp, cin), w1_ref[...],
                preferred_element_type=jnp.float32)
    h = jnp.clip(h, 0.0, 6.0).reshape(th + 2, Wpp, chid)

    # ---- depthwise 3x3 'valid' + ReLU6 --------------------------------------
    # Hoist the unaligned W (sublane) shifts: 3 column views, then only aligned
    # row (third-last dim) slices inside the dh loop.
    wdw = wdw_ref[...]                         # [3, 3, chid]
    acc = jnp.zeros((th, W, chid), jnp.float32)
    for dw in range(3):
        col = h[:, dw:dw + W, :]               # [th+2, W, chid]
        for dh in range(3):
            acc = acc + col[dh:dh + th] * wdw[dh, dw, :]
    acc = jnp.clip(acc, 0.0, 6.0)

    # ---- 1x1 projection: single dense matmul + one dense store --------------
    y = jnp.dot(acc.reshape(th * W, chid), w2_ref[...],
                preferred_element_type=jnp.float32)
    o_ref[0] = y.reshape(th, W, o_ref.shape[3]).astype(o_ref.dtype)


def _pick_band_rows(H):
    """Output-row-band height: small enough to bound VMEM, dividing H."""
    for d in (8, 16, 32, 4, 2):
        if H % d == 0:
            return d
    return H


# ---------------------------- parameter init ----------------------------------
def init_params(key, inp, oup, expand_ratio):
    hidden = int(inp * expand_ratio)
    k1, k2, k3 = jax.random.split(key, 3)
    return dict(
        w1=0.2 * jax.random.normal(k1, (inp, hidden), jnp.float32),    # 1x1 expand
        wdw=0.2 * jax.random.normal(k2, (3, 3, hidden), jnp.float32),  # depthwise 3x3
        w2=0.2 * jax.random.normal(k3, (hidden, oup), jnp.float32),    # 1x1 project
    )


# --------------------------- forward (Pallas path) -----------------------------
def inverted_residual_forward(x, params):
    w1, wdw, w2 = params['w1'], params['wdw'], params['w2']
    B, cin, H, W = x.shape
    chid = w1.shape[1]
    coup = w2.shape[1]
    Hp, Wp = H + 2, W + 2
    Wpp = -(-Wp // 8) * 8                      # width padded to a multiple of 8

    # NCHW -> NHWC on the SMALL input (cheap).
    xl = jnp.transpose(x, (0, 2, 3, 1))
    # ReflectionPad2d(1) hoisted before the pointwise 1x1+ReLU6 (it commutes
    # with padding-by-copying), so the large hidden tensor is never padded.
    xp = jnp.pad(xl, ((0, 0), (1, 1), (1, 1), (0, 0)), mode='reflect')
    if Wpp != Wp:
        # Zero right-pad for tile alignment; junk columns never reach output
        # (the depthwise taps only read columns < W + 2).
        xp = jnp.pad(xp, ((0, 0), (0, 0), (0, Wpp - Wp), (0, 0)))

    th = _pick_band_rows(H)
    nb = H // th

    y = pl.pallas_call(
        functools.partial(_fused_bottleneck_kernel, th=th, W=W, Wpp=Wpp),
        out_shape=jax.ShapeDtypeStruct((B, H, W, coup), x.dtype),
        grid_spec=pltpu.PrefetchScalarGridSpec(
            num_scalar_prefetch=0,
            grid=(B, nb),
            in_specs=[
                # Whole (small) padded input image; block index changes only
                # with b, so it is DMA'd once per image and stays resident
                # across all row bands of that image.
                pl.BlockSpec((1, Hp, Wpp, cin), lambda b, r: (b, 0, 0, 0)),
                pl.BlockSpec((cin, chid), lambda b, r: (0, 0)),       # resident
                pl.BlockSpec((3, 3, chid), lambda b, r: (0, 0, 0)),   # resident
                pl.BlockSpec((chid, coup), lambda b, r: (0, 0)),      # resident
            ],
            out_specs=pl.BlockSpec((1, th, W, coup), lambda b, r: (b, r, 0, 0)),
        ),
        compiler_params=pltpu.CompilerParams(
            dimension_semantics=("parallel", "parallel")),
    )(xp, w1, wdw, w2)

    # TODO(synk): if the consumer accepts channels-last, skip this transpose.
    return jnp.transpose(y, (0, 3, 1, 2))      # NHWC -> NCHW


# --------------------------- pure-JAX reference --------------------------------
def inverted_residual_reference(x, params):
    w1, wdw, w2 = params['w1'], params['wdw'], params['w2']
    chid = w1.shape[1]
    xl = jnp.transpose(x, (0, 2, 3, 1))
    h = jnp.clip(jnp.einsum('bhwc,cd->bhwd', xl, w1), 0.0, 6.0)
    hp = jnp.pad(h, ((0, 0), (1, 1), (1, 1), (0, 0)), mode='reflect')
    dw = jax.lax.conv_general_dilated(
        hp, wdw[:, :, None, :], (1, 1), 'VALID',
        dimension_numbers=('NHWC', 'HWIO', 'NHWC'),
        feature_group_count=chid)
    dw = jnp.clip(dw, 0.0, 6.0)
    y = jnp.einsum('bhwc,cd->bhwd', dw, w2)
    return jnp.transpose(y, (0, 3, 1, 2))


if __name__ == "__main__":
    # InvertedResidualBlock(inp=8, oup=16, expand_ratio=2) -> hidden_dim = 16
    B, Cin, H, W = 2, 8, 16, 16
    oup, expand_ratio = 16, 2

    key = jax.random.PRNGKey(0)
    kx, kp = jax.random.split(key)
    x = jax.random.normal(kx, (B, Cin, H, W), jnp.float32)
    params = init_params(kp, Cin, oup, expand_ratio)

    out = jax.block_until_ready(inverted_residual_forward(x, params))
    ref = jax.block_until_ready(inverted_residual_reference(x, params))

    np.testing.assert_allclose(np.asarray(out), np.asarray(ref), rtol=1e-3, atol=1e-3)
    assert out.shape == (B, oup, H, W)
    print("KERNEL_OK")
</pallas_src>

<mosaic_0001>
module attributes {stable_mosaic.version = 11 : i64} {
  func.func @_fused_bottleneck_kernel(%arg0: i32, %arg1: i32, %arg2: memref<1x18x24x8xf32, #tpu.memory_space<vmem>>, %arg3: memref<8x16xf32, #tpu.memory_space<vmem>>, %arg4: memref<3x3x16xf32, #tpu.memory_space<vmem>>, %arg5: memref<16x16xf32, #tpu.memory_space<vmem>>, %arg6: memref<1x8x16x16xf32, #tpu.memory_space<vmem>>) attributes {dimension_semantics = [#tpu.dimension_semantics<parallel>, #tpu.dimension_semantics<parallel>], iteration_bounds = array<i64: 2, 2>, scalar_prefetch = 0 : i64, scratch_operands = 0 : i64, tpu.core_type = #tpu.core_type<tc>, window_params = [{transform_indices = @transform_0, window_bounds = array<i64: 1, 18, 24, 8>}, {pipeline_mode = #tpu.pipeline_mode<synchronous>, transform_indices = @transform_1, window_bounds = array<i64: 8, 16>}, {pipeline_mode = #tpu.pipeline_mode<synchronous>, transform_indices = @transform_2, window_bounds = array<i64: 3, 3, 16>}, {pipeline_mode = #tpu.pipeline_mode<synchronous>, transform_indices = @transform_3, window_bounds = array<i64: 16, 16>}, {transform_indices = @transform_4, window_bounds = array<i64: 1, 8, 16, 16>}]} {
    %c8_i32 = arith.constant 8 : i32
    %0 = arith.muli %arg1, %c8_i32 : i32
    %1 = tpu.assume_multiple %0, 8 : i32
    %c0 = arith.constant 0 : index
    %2 = arith.index_cast %1 : i32 to index
    %c0_0 = arith.constant 0 : index
    %c0_1 = arith.constant 0 : index
    %3 = vector.load %arg2[%c0, %2, %c0_0, %c0_1] : memref<1x18x24x8xf32, #tpu.memory_space<vmem>>, vector<1x10x24x8xf32>
    %4 = vector.shape_cast %3 : vector<1x10x24x8xf32> to vector<10x24x8xf32>
    %5 = vector.shape_cast %4 : vector<10x24x8xf32> to vector<240x8xf32>
    %c0_2 = arith.constant 0 : index
    %c0_3 = arith.constant 0 : index
    %6 = vector.load %arg3[%c0_2, %c0_3] : memref<8x16xf32, #tpu.memory_space<vmem>>, vector<8x16xf32>
    %cst = arith.constant dense<0.000000e+00> : vector<240x16xf32>
    %7 = tpu.matmul %5, %6, %cst {dimension_numbers = #tpu.dot_dimension_numbers<[1], [0], [0], [1], [0, 0, 1, 1], [], []>} : vector<240x8xf32>, vector<8x16xf32>, vector<240x16xf32> -> vector<240x16xf32>
    %cst_4 = arith.constant 0.000000e+00 : f32
    %cst_5 = arith.constant 6.000000e+00 : f32
    %8 = vector.broadcast %cst_4 : f32 to vector<240x16xf32>
    %9 = arith.maximumf %8, %7 : vector<240x16xf32>
    %10 = vector.broadcast %cst_5 : f32 to vector<240x16xf32>
    %11 = arith.minimumf %10, %9 : vector<240x16xf32>
    %12 = vector.shape_cast %11 : vector<240x16xf32> to vector<10x24x16xf32>
    %c0_6 = arith.constant 0 : index
    %c0_7 = arith.constant 0 : index
    %c0_8 = arith.constant 0 : index
    %13 = vector.load %arg4[%c0_6, %c0_7, %c0_8] : memref<3x3x16xf32, #tpu.memory_space<vmem>>, vector<3x3x16xf32>
    %cst_9 = arith.constant 0.000000e+00 : f32
    %14 = vector.broadcast %cst_9 : f32 to vector<8x16x16xf32>
    %15 = vector.extract_strided_slice %12 {offsets = [0, 0, 0], sizes = [10, 16, 16], strides = [1, 1, 1]} : vector<10x24x16xf32> to vector<10x16x16xf32>
    %16 = vector.extract_strided_slice %15 {offsets = [0, 0, 0], sizes = [8, 16, 16], strides = [1, 1, 1]} : vector<10x16x16xf32> to vector<8x16x16xf32>
    %17 = vector.extract_strided_slice %13 {offsets = [0, 0, 0], sizes = [1, 1, 16], strides = [1, 1, 1]} : vector<3x3x16xf32> to vector<1x1x16xf32>
    %18 = vector.shape_cast %17 : vector<1x1x16xf32> to vector<16xf32>
    %19 = vector.shape_cast %18 : vector<16xf32> to vector<1x1x16xf32>
    %20 = vector.broadcast %19 : vector<1x1x16xf32> to vector<8x16x16xf32>
    %21 = arith.mulf %16, %20 : vector<8x16x16xf32>
    %22 = arith.addf %14, %21 : vector<8x16x16xf32>
    %23 = vector.extract_strided_slice %15 {offsets = [1, 0, 0], sizes = [8, 16, 16], strides = [1, 1, 1]} : vector<10x16x16xf32> to vector<8x16x16xf32>
    %24 = vector.extract_strided_slice %13 {offsets = [1, 0, 0], sizes = [1, 1, 16], strides = [1, 1, 1]} : vector<3x3x16xf32> to vector<1x1x16xf32>
    %25 = vector.shape_cast %24 : vector<1x1x16xf32> to vector<16xf32>
    %26 = vector.shape_cast %25 : vector<16xf32> to vector<1x1x16xf32>
    %27 = vector.broadcast %26 : vector<1x1x16xf32> to vector<8x16x16xf32>
    %28 = arith.mulf %23, %27 : vector<8x16x16xf32>
    %29 = arith.addf %22, %28 : vector<8x16x16xf32>
    %30 = vector.extract_strided_slice %15 {offsets = [2, 0, 0], sizes = [8, 16, 16], strides = [1, 1, 1]} : vector<10x16x16xf32> to vector<8x16x16xf32>
    %31 = vector.extract_strided_slice %13 {offsets = [2, 0, 0], sizes = [1, 1, 16], strides = [1, 1, 1]} : vector<3x3x16xf32> to vector<1x1x16xf32>
    %32 = vector.shape_cast %31 : vector<1x1x16xf32> to vector<16xf32>
    %33 = vector.shape_cast %32 : vector<16xf32> to vector<1x1x16xf32>
    %34 = vector.broadcast %33 : vector<1x1x16xf32> to vector<8x16x16xf32>
    %35 = arith.mulf %30, %34 : vector<8x16x16xf32>
    %36 = arith.addf %29, %35 : vector<8x16x16xf32>
    %37 = vector.extract_strided_slice %12 {offsets = [0, 1, 0], sizes = [10, 16, 16], strides = [1, 1, 1]} : vector<10x24x16xf32> to vector<10x16x16xf32>
    %38 = vector.extract_strided_slice %37 {offsets = [0, 0, 0], sizes = [8, 16, 16], strides = [1, 1, 1]} : vector<10x16x16xf32> to vector<8x16x16xf32>
    %39 = vector.extract_strided_slice %13 {offsets = [0, 1, 0], sizes = [1, 1, 16], strides = [1, 1, 1]} : vector<3x3x16xf32> to vector<1x1x16xf32>
    %40 = vector.shape_cast %39 : vector<1x1x16xf32> to vector<16xf32>
    %41 = vector.shape_cast %40 : vector<16xf32> to vector<1x1x16xf32>
    %42 = vector.broadcast %41 : vector<1x1x16xf32> to vector<8x16x16xf32>
    %43 = arith.mulf %38, %42 : vector<8x16x16xf32>
    %44 = arith.addf %36, %43 : vector<8x16x16xf32>
    %45 = vector.extract_strided_slice %37 {offsets = [1, 0, 0], sizes = [8, 16, 16], strides = [1, 1, 1]} : vector<10x16x16xf32> to vector<8x16x16xf32>
    %46 = vector.extract_strided_slice %13 {offsets = [1, 1, 0], sizes = [1, 1, 16], strides = [1, 1, 1]} : vector<3x3x16xf32> to vector<1x1x16xf32>
    %47 = vector.shape_cast %46 : vector<1x1x16xf32> to vector<16xf32>
    %48 = vector.shape_cast %47 : vector<16xf32> to vector<1x1x16xf32>
    %49 = vector.broadcast %48 : vector<1x1x16xf32> to vector<8x16x16xf32>
    %50 = arith.mulf %45, %49 : vector<8x16x16xf32>
    %51 = arith.addf %44, %50 : vector<8x16x16xf32>
    %52 = vector.extract_strided_slice %37 {offsets = [2, 0, 0], sizes = [8, 16, 16], strides = [1, 1, 1]} : vector<10x16x16xf32> to vector<8x16x16xf32>
    %53 = vector.extract_strided_slice %13 {offsets = [2, 1, 0], sizes = [1, 1, 16], strides = [1, 1, 1]} : vector<3x3x16xf32> to vector<1x1x16xf32>
    %54 = vector.shape_cast %53 : vector<1x1x16xf32> to vector<16xf32>
    %55 = vector.shape_cast %54 : vector<16xf32> to vector<1x1x16xf32>
    %56 = vector.broadcast %55 : vector<1x1x16xf32> to vector<8x16x16xf32>
    %57 = arith.mulf %52, %56 : vector<8x16x16xf32>
    %58 = arith.addf %51, %57 : vector<8x16x16xf32>
    %59 = vector.extract_strided_slice %12 {offsets = [0, 2, 0], sizes = [10, 16, 16], strides = [1, 1, 1]} : vector<10x24x16xf32> to vector<10x16x16xf32>
    %60 = vector.extract_strided_slice %59 {offsets = [0, 0, 0], sizes = [8, 16, 16], strides = [1, 1, 1]} : vector<10x16x16xf32> to vector<8x16x16xf32>
    %61 = vector.extract_strided_slice %13 {offsets = [0, 2, 0], sizes = [1, 1, 16], strides = [1, 1, 1]} : vector<3x3x16xf32> to vector<1x1x16xf32>
    %62 = vector.shape_cast %61 : vector<1x1x16xf32> to vector<16xf32>
    %63 = vector.shape_cast %62 : vector<16xf32> to vector<1x1x16xf32>
    %64 = vector.broadcast %63 : vector<1x1x16xf32> to vector<8x16x16xf32>
    %65 = arith.mulf %60, %64 : vector<8x16x16xf32>
    %66 = arith.addf %58, %65 : vector<8x16x16xf32>
    %67 = vector.extract_strided_slice %59 {offsets = [1, 0, 0], sizes = [8, 16, 16], strides = [1, 1, 1]} : vector<10x16x16xf32> to vector<8x16x16xf32>
    %68 = vector.extract_strided_slice %13 {offsets = [1, 2, 0], sizes = [1, 1, 16], strides = [1, 1, 1]} : vector<3x3x16xf32> to vector<1x1x16xf32>
    %69 = vector.shape_cast %68 : vector<1x1x16xf32> to vector<16xf32>
    %70 = vector.shape_cast %69 : vector<16xf32> to vector<1x1x16xf32>
    %71 = vector.broadcast %70 : vector<1x1x16xf32> to vector<8x16x16xf32>
    %72 = arith.mulf %67, %71 : vector<8x16x16xf32>
    %73 = arith.addf %66, %72 : vector<8x16x16xf32>
    %74 = vector.extract_strided_slice %59 {offsets = [2, 0, 0], sizes = [8, 16, 16], strides = [1, 1, 1]} : vector<10x16x16xf32> to vector<8x16x16xf32>
    %75 = vector.extract_strided_slice %13 {offsets = [2, 2, 0], sizes = [1, 1, 16], strides = [1, 1, 1]} : vector<3x3x16xf32> to vector<1x1x16xf32>
    %76 = vector.shape_cast %75 : vector<1x1x16xf32> to vector<16xf32>
    %77 = vector.shape_cast %76 : vector<16xf32> to vector<1x1x16xf32>
    %78 = vector.broadcast %77 : vector<1x1x16xf32> to vector<8x16x16xf32>
    %79 = arith.mulf %74, %78 : vector<8x16x16xf32>
    %80 = arith.addf %73, %79 : vector<8x16x16xf32>
    %cst_10 = arith.constant 0.000000e+00 : f32
    %cst_11 = arith.constant 6.000000e+00 : f32
    %81 = vector.broadcast %cst_10 : f32 to vector<8x16x16xf32>
    %82 = arith.maximumf %81, %80 : vector<8x16x16xf32>
    %83 = vector.broadcast %cst_11 : f32 to vector<8x16x16xf32>
    %84 = arith.minimumf %83, %82 : vector<8x16x16xf32>
    %85 = vector.shape_cast %84 : vector<8x16x16xf32> to vector<128x16xf32>
    %c0_12 = arith.constant 0 : index
    %c0_13 = arith.constant 0 : index
    %86 = vector.load %arg5[%c0_12, %c0_13] : memref<16x16xf32, #tpu.memory_space<vmem>>, vector<16x16xf32>
    %cst_14 = arith.constant dense<0.000000e+00> : vector<128x16xf32>
    %87 = tpu.matmul %85, %86, %cst_14 {dimension_numbers = #tpu.dot_dimension_numbers<[1], [0], [0], [1], [0, 0, 1, 1], [], []>} : vector<128x16xf32>, vector<16x16xf32>, vector<128x16xf32> -> vector<128x16xf32>
    %88 = vector.shape_cast %87 : vector<128x16xf32> to vector<8x16x16xf32>
    %c0_15 = arith.constant 0 : index
    %c0_16 = arith.constant 0 : index
    %c0_17 = arith.constant 0 : index
    %c0_18 = arith.constant 0 : index
    %89 = vector.load %arg6[%c0_15, %c0_16, %c0_17, %c0_18] : memref<1x8x16x16xf32, #tpu.memory_space<vmem>>, vector<1x8x16x16xf32>
    %90 = vector.shape_cast %89 : vector<1x8x16x16xf32> to vector<8x16x16xf32>
    %91 = vector.shape_cast %88 : vector<8x16x16xf32> to vector<1x8x16x16xf32>
    tpu.vector_store %arg6[%c0_15, %c0_16, %c0_17, %c0_18], %91 {strides = array<i32>} : memref<1x8x16x16xf32, #tpu.memory_space<vmem>>, vector<1x8x16x16xf32>,
    return
  }
  func.func @transform_0(%arg0: i32, %arg1: i32) -> (i32, i32, i32, i32) {
    %c0_i32 = arith.constant 0 : i32
    %c0_i32_0 = arith.constant 0 : i32
    %c0_i32_1 = arith.constant 0 : i32
    %c0_i32_2 = arith.constant 0 : i32
    return %arg0, %c0_i32, %c0_i32_0, %c0_i32_1 : i32, i32, i32, i32
  }
  func.func @transform_1(%arg0: i32, %arg1: i32) -> (i32, i32) {
    %c0_i32 = arith.constant 0 : i32
    %c0_i32_0 = arith.constant 0 : i32
    %c0_i32_1 = arith.constant 0 : i32
    return %c0_i32, %c0_i32_0 : i32, i32
  }
  func.func @transform_2(%arg0: i32, %arg1: i32) -> (i32, i32, i32) {
    %c0_i32 = arith.constant 0 : i32
    %c0_i32_0 = arith.constant 0 : i32
    %c0_i32_1 = arith.constant 0 : i32
    %c0_i32_2 = arith.constant 0 : i32
    return %c0_i32, %c0_i32_0, %c0_i32_1 : i32, i32, i32
  }
  func.func @transform_3(%arg0: i32, %arg1: i32) -> (i32, i32) {
    %c0_i32 = arith.constant 0 : i32
    %c0_i32_0 = arith.constant 0 : i32
    %c0_i32_1 = arith.constant 0 : i32
    return %c0_i32, %c0_i32_0 : i32, i32
  }
  func.func @transform_4(%arg0: i32, %arg1: i32) -> (i32, i32, i32, i32) {
    %c0_i32 = arith.constant 0 : i32
    %c0_i32_0 = arith.constant 0 : i32
    %c0_i32_1 = arith.constant 0 : i32
    return %arg0, %arg1, %c0_i32, %c0_i32_0 : i32, i32, i32, i32
  }
}

</mosaic_0001>

<llo_original>
// kernel: tpu_custom_call.1
$region0: #{tpu_custom_call.1}
  #allocation0 [shape = 'u32[]', space=smem, size = 0x4, offset = 0x4, fixed_abs, tag = 'smem constant byte address 0x4 - core index']
  #allocation1 [shape = 'u32[144,128]{1,0:T(1,128)}', space=vmem, size = 0x12000, scoped, tag = 'internal scratch']
  %s0 = inlined_call_operand.vmem [shape: f32[2,18,24,8], index: 0, kind: input, shape index: {}]
  %s1 = inlined_call_operand.vmem [shape: f32[8,16], index: 1, kind: input, shape index: {}]
  %s2 = inlined_call_operand.vmem [shape: f32[3,3,16], index: 2, kind: input, shape index: {}]
  %s3 = inlined_call_operand.vmem [shape: f32[16,16], index: 3, kind: input, shape index: {}]
  %s4 = inlined_call_operand.hbm [shape: f32[2,16,16,16], index: 4, kind: output, shape index: {}]
  %s5 = sld [smem:[#allocation0]]
  $region49: #{tpu_custom_call.1} parent=0
    _
  %s7 = ssub.s32 1, %s5
  %s8 = scalar_select 0, %s7, %s5
  $region1: #{tpu_custom_call.1} parent=0
    #allocation2 [shape = 'u8[131072]{0}', space=vmem, size = 0x20000, scoped, tag = 'output window, operand 0']
    #allocation3 [shape = 's32[2]{0}', space=sflag, size = 0x8, scoped, tag = 'scoped memory for tpu_custom_call.1']
    %9 = vsyncpa [#allocation3], 0
    %s10 = scalar_lea.sflag [#allocation3], 1
    %11 = vsyncpa %s10, 0
    loop: start=0, step=1, limit=6
    $region2: #{tpu_custom_call.1} parent=1 // loop_pre_header
      _
    $region3: #{tpu_custom_call.1} parent=1 // loop_header
      %s13 = sphi 0, %s17
      %p14 = scmp.ge.s32.totalorder %s13, 6
      %s20 = sphi 0, %s32
      %s21 = sphi 0, %s28
      %s22 = sphi 0, %s20
      %s23 = sphi 0, %s21
      %s24 = sphi 0, %s22
      %s25 = sphi 0, %s23
      %s35 = sphi 0, %s37
      %s38 = sphi 0, %s35
      %s39 = sphi 0, %s38
      %s55 = sphi 0, %s39
      %s59 = sphi 0, %s59
      %s61 = sphi 0, %s59
      %s62 = sphi 0, %s61
      %s76 = sphi 0, %s62
      %s80 = sphi 0, %s80
      %s82 = sphi 0, %s80
      %s83 = sphi 0, %s82
      %s97 = sphi 0, %s83
      %s101 = sphi 0, %s101
      %s103 = sphi 0, %s101
      %s104 = sphi 0, %s103
      %s118 = sphi 0, %s104
      %s126 = sphi 0, %s128
      %s129 = sphi 0, %s126
      %s130 = sphi 0, %s129
      %s146 = sphi 0, %s130
    $region4: #{tpu_custom_call.1} parent=1 // loop_header_branch
      %16 = sbr.rel (%p14) target = $region8
    $region5: #{tpu_custom_call.1} parent=1 // loop_body
      %s18 = ssub.s32 %s13, 1
      %s19 = ssub.s32 %s13, 2
      %s26 = sadd.s32 1, %s21
      %p27 = scmp.ge.s32.totalorder %s26, 2
      %s28 = scalar_select %p27, 0, %s26
      %s29 = sadd.s32 1, %s20
      %s30 = scalar_select %p27, %s29, %s20
      %p31 = scmp.ge.s32.totalorder %s30, 2
      %s32 = scalar_select %p31, 0, %s30
      %s33 = ssub.s32 %s20, %s32
      %p34 = scmp.eq.s32.totalorder %s33, 0
      %s36 = sadd.s32 %s35, 1
      %s37 = scalar_select %p34, %s35, %s36
      %p40 = pneg %p34
      %p41 = scmp.eq.s32.totalorder %s13, 3
      %p42 = por %p40, %p41
      %p43 = scmp.ne.s32.totalorder %s35, %s38
      %p44 = scmp.eq.s32.totalorder %s13, 0
      %p45 = por %p43, %p44
      %p46 = scmp.ne.s32.totalorder %s35, %s38
      %p47 = scmp.eq.s32.totalorder %s18, 3
      %p48 = por %p46, %p47
      %p49 = scmp.ne.s32.totalorder %s38, %s39
      %p50 = scmp.eq.s32.totalorder %s18, 0
      %p51 = por %p49, %p50
      %p52 = scmp.ne.s32.totalorder %s38, %s39
      %p53 = scmp.eq.s32.totalorder %s19, 3
      %p54 = por %p52, %p53
      %p56 = scmp.ne.s32.totalorder %s39, %s55
      %p57 = scmp.eq.s32.totalorder %s19, 0
      %p58 = por %p56, %p57
      %s60 = sadd.s32 %s59, 1
      %p63 = scmp.eq.s32.totalorder %s13, 3
      %p64 = scmp.ne.s32.totalorder %s59, %s61
      %p65 = scmp.eq.s32.totalorder %s13, 0
      %p66 = por %p64, %p65
      %p67 = scmp.ne.s32.totalorder %s59, %s61
      %p68 = scmp.eq.s32.totalorder %s18, 3
      %p69 = por %p67, %p68
      %p70 = scmp.ne.s32.totalorder %s61, %s62
      %p71 = scmp.eq.s32.totalorder %s18, 0
      %p72 = por %p70, %p71
      %p73 = scmp.ne.s32.totalorder %s61, %s62
      %p74 = scmp.eq.s32.totalorder %s19, 3
      %p75 = por %p73, %p74
      %p77 = scmp.ne.s32.totalorder %s62, %s76
      %p78 = scmp.eq.s32.totalorder %s19, 0
      %p79 = por %p77, %p78
      %s81 = sadd.s32 %s80, 1
      %p84 = scmp.eq.s32.totalorder %s13, 3
      %p85 = scmp.ne.s32.totalorder %s80, %s82
      %p86 = scmp.eq.s32.totalorder %s13, 0
      %p87 = por %p85, %p86
      %p88 = scmp.ne.s32.totalorder %s80, %s82
      %p89 = scmp.eq.s32.totalorder %s18, 3
      %p90 = por %p88, %p89
      %p91 = scmp.ne.s32.totalorder %s82, %s83
      %p92 = scmp.eq.s32.totalorder %s18, 0
      %p93 = por %p91, %p92
      %p94 = scmp.ne.s32.totalorder %s82, %s83
      %p95 = scmp.eq.s32.totalorder %s19, 3
      %p96 = por %p94, %p95
      %p98 = scmp.ne.s32.totalorder %s83, %s97
      %p99 = scmp.eq.s32.totalorder %s19, 0
      %p100 = por %p98, %p99
      %s102 = sadd.s32 %s101, 1
      %p105 = scmp.eq.s32.totalorder %s13, 3
      %p106 = scmp.ne.s32.totalorder %s101, %s103
      %p107 = scmp.eq.s32.totalorder %s13, 0
      %p108 = por %p106, %p107
      %p109 = scmp.ne.s32.totalorder %s101, %s103
      %p110 = scmp.eq.s32.totalorder %s18, 3
      %p111 = por %p109, %p110
      %p112 = scmp.ne.s32.totalorder %s103, %s104
      %p113 = scmp.eq.s32.totalorder %s18, 0
      %p114 = por %p112, %p113
      %p115 = scmp.ne.s32.totalorder %s103, %s104
      %p116 = scmp.eq.s32.totalorder %s19, 3
      %p117 = por %p115, %p116
      %p119 = scmp.ne.s32.totalorder %s104, %s118
      %p120 = scmp.eq.s32.totalorder %s19, 0
      %p121 = por %p119, %p120
      %s122 = ssub.s32 %s20, %s32
      %s123 = ssub.s32 %s21, %s28
      %s124 = sor.u32 %s122, %s123
      %p125 = scmp.eq.s32.totalorder %s124, 0
      %s127 = sadd.s32 %s126, 1
      %s128 = scalar_select %p125, %s126, %s127
      %p131 = pneg %p125
      %p132 = scmp.eq.s32.totalorder %s13, 3
      %p133 = por %p131, %p132
      %p134 = scmp.ne.s32.totalorder %s126, %s129
      %p135 = scmp.eq.s32.totalorder %s13, 0
      %p136 = por %p134, %p135
      %p137 = scmp.ne.s32.totalorder %s126, %s129
      %p138 = scmp.eq.s32.totalorder %s18, 3
      %p139 = por %p137, %p138
      %p140 = scmp.ne.s32.totalorder %s129, %s130
      %p141 = scmp.eq.s32.totalorder %s18, 0
      %p142 = por %p140, %p141
      %p143 = scmp.ne.s32.totalorder %s129, %s130
      %p144 = scmp.eq.s32.totalorder %s19, 3
      %p145 = por %p143, %p144
      %p147 = scmp.ne.s32.totalorder %s130, %s146
      %p148 = scmp.eq.s32.totalorder %s19, 0
      %p149 = por %p147, %p148
      %p150 = scmp.le.s32.totalorder 1, %s13
      %p151 = scmp.lt.s32.totalorder %s13, 5
      %p152 = pnand %p150, %p151
      %p153 = pneg %p152
      // Predicated region
      $region9: #{tpu_custom_call.1} parent=5 // pred_check
        _
      $region10: #{tpu_custom_call.1} parent=5 // pred_check_branch
        %155 = sbr.rel (%p152) target = $region12
      $region11: #{tpu_custom_call.1} parent=5 // pred_region
        %s156 = ssub.s32 %s13, 1
        // Predicated region
        $region13: #{tpu_custom_call.1} parent=11 // pred_check
          %p157 = pneg %p72
        $region14: #{tpu_custom_call.1} parent=11 // pred_check_branch
          %159 = sbr.rel (%p157) target = $region16
        $region15: #{tpu_custom_call.1} parent=11 // pred_region
          _
        $region16: #{tpu_custom_call.1} parent=11 // pred_fallthru
          _
        // Predicated region
        $region17: #{tpu_custom_call.1} parent=11 // pred_check
          %p160 = pneg %p93
        $region18: #{tpu_custom_call.1} parent=11 // pred_check_branch
          %162 = sbr.rel (%p160) target = $region20
        $region19: #{tpu_custom_call.1} parent=11 // pred_region
          _
        $region20: #{tpu_custom_call.1} parent=11 // pred_fallthru
          _
        // Predicated region
        $region21: #{tpu_custom_call.1} parent=11 // pred_check
          %p163 = pneg %p114
        $region22: #{tpu_custom_call.1} parent=11 // pred_check_branch
          %165 = sbr.rel (%p163) target = $region24
        $region23: #{tpu_custom_call.1} parent=11 // pred_region
          _
        $region24: #{tpu_custom_call.1} parent=11 // pred_fallthru
          _
      $region12: #{tpu_custom_call.1} parent=5 // pred_fallthru
        _
      %p166 = scmp.lt.s32.totalorder %s13, 4
      // Predicated region
      $region25: #{tpu_custom_call.1} parent=5 // pred_check
        %p167 = pneg %p166
      $region26: #{tpu_custom_call.1} parent=5 // pred_check_branch
        %169 = sbr.rel (%p167) target = $region28
      $region27: #{tpu_custom_call.1} parent=5 // pred_region
        // Predicated region
        $region29: #{tpu_custom_call.1} parent=27 // pred_check
          %p170 = pneg %p45
        $region30: #{tpu_custom_call.1} parent=27 // pred_check_branch
          %172 = sbr.rel (%p170) target = $region32
        $region31: #{tpu_custom_call.1} parent=27 // pred_region
          %p173 = scmp.lt.s32.totalorder %s20, 1
          %s174 = scalar_select %p173, %s20, 1
          %s175 = smul.addr %s174, 54
          %s176 = smul.addr %s175, 8
          %s177 = scalar_lea.vmem %s0, %s176
        $region32: #{tpu_custom_call.1} parent=27 // pred_fallthru
          _
      $region28: #{tpu_custom_call.1} parent=5 // pred_fallthru
        _
      %p178 = scmp.le.s32.totalorder 1, %s13
      %p179 = scmp.lt.s32.totalorder %s13, 5
      %p180 = pnand %p178, %p179
      %p181 = pneg %p180
      // Predicated region
      $region33: #{tpu_custom_call.1} parent=5 // pred_check
        _
      $region34: #{tpu_custom_call.1} parent=5 // pred_check_branch
        %183 = sbr.rel (%p180) target = $region36
      $region35: #{tpu_custom_call.1} parent=5 // pred_region
        %s184 = ssub.s32 %s13, 1
        %p185 = scmp.lt.s32.totalorder %s22, 1
        %s186 = scalar_select %p185, %s22, 1
        %s187 = smul.addr %s186, 54
        %s188 = smul.addr %s187, 8
        %s189 = scalar_lea.vmem %s0, %s188
        %p190 = pneg %p51
        %p191 = pneg %p48
        %p192 = pneg %p72
        %p193 = pneg %p69
        %p194 = pneg %p93
        %p195 = pneg %p90
        %p196 = pneg %p114
        %p197 = pneg %p111
        %p198 = pneg %p142
        %p199 = pneg %p139
        %s200 = sand.u32 %s129, 1
        %s201 = scalar_lea.sflag [#allocation3], %s200
        %s202 = sand.u32 %s129, 1
        %s203 = smul.addr %s202, 128
        %s204 = scalar_lea.vmem [#allocation2], %s203
        %p205 = scmp.lt.s32.totalorder %s22, 1
        %s206 = scalar_select %p205, %s22, 1
        %s207 = smul.addr %s206, 54
        %s208 = smul.addr %s207, 8
        %s209 = scalar_lea.vmem %s0, %s208
        %s210 = smul.u32 8, %s23
        %s211 = smul.u32 %s23, 8
        %s212 = smul.u32 %s211, 24
        %s213 = scalar_lea.vmem %s209, %s212
        %v214 = vld [vmem:[%s213] sm:$0xff]
        %v215 = vld [vmem:[%s213 + $0x8] sm:$0xff]
        %v216 = vld [vmem:[%s213 + $0x10] sm:$0xff]
        %v217 = vld [vmem:[%s213 + $0x18] sm:$0xff]
        %v218 = vld [vmem:[%s213 + $0x20] sm:$0xff]
        %v219 = vld [vmem:[%s213 + $0x28] sm:$0xff]
        %v220 = vld [vmem:[%s213 + $0x30] sm:$0xff]
        %v221 = vld [vmem:[%s213 + $0x38] sm:$0xff]
        %v222 = vld [vmem:[%s213 + $0x40] sm:$0xff]
        %v223 = vld [vmem:[%s213 + $0x48] sm:$0xff]
        %v224 = vld [vmem:[%s213 + $0x50] sm:$0xff]
        %v225 = vld [vmem:[%s213 + $0x58] sm:$0xff]
        %v226 = vld [vmem:[%s213 + $0x60] sm:$0xff]
        %v227 = vld [vmem:[%s213 + $0x68] sm:$0xff]
        %v228 = vld [vmem:[%s213 + $0x70] sm:$0xff]
        %v229 = vld [vmem:[%s213 + $0x78] sm:$0xff]
        %v230 = vld [vmem:[%s213 + $0x80] sm:$0xff]
        %v231 = vld [vmem:[%s213 + $0x88] sm:$0xff]
        %v232 = vld [vmem:[%s213 + $0x90] sm:$0xff]
        %v233 = vld [vmem:[%s213 + $0x98] sm:$0xff]
        %v234 = vld [vmem:[%s213 + $0xa0] sm:$0xff]
        %v235 = vld [vmem:[%s213 + $0xa8] sm:$0xff]
        %v236 = vld [vmem:[%s213 + $0xb0] sm:$0xff]
        %v237 = vld [vmem:[%s213 + $0xb8] sm:$0xff]
        %v238 = vld [vmem:[%s213 + $0xc0] sm:$0xff]
        %v239 = vld [vmem:[%s213 + $0xc8] sm:$0xff]
        %v240 = vld [vmem:[%s213 + $0xd0] sm:$0xff]
        %v241 = vld [vmem:[%s213 + $0xd8] sm:$0xff]
        %v242 = vld [vmem:[%s213 + $0xe0] sm:$0xff]
        %v243 = vld [vmem:[%s213 + $0xe8] sm:$0xff]
        %v244 = vld [vmem:[%s1] sm:$0xff]
        %vm245 = vcmask 64512
        %v247 = vsel %vm245, %v214, 0
        %v250 = vsel %vm245, %v215, 0
        %v253 = vsel %vm245, %v216, 0
        %v256 = vsel %vm245, %v217, 0
        %v259 = vsel %vm245, %v218, 0
        %v262 = vsel %vm245, %v219, 0
        %v265 = vsel %vm245, %v220, 0
        %v268 = vsel %vm245, %v221, 0
        %v271 = vsel %vm245, %v222, 0
        %v274 = vsel %vm245, %v223, 0
        %v277 = vsel %vm245, %v224, 0
        %v280 = vsel %vm245, %v225, 0
        %v283 = vsel %vm245, %v226, 0
        %v286 = vsel %vm245, %v227, 0
        %v289 = vsel %vm245, %v228, 0
        %v292 = vsel %vm245, %v229, 0
        %v295 = vsel %vm245, %v230, 0
        %v298 = vsel %vm245, %v231, 0
        %v301 = vsel %vm245, %v232, 0
        %v304 = vsel %vm245, %v233, 0
        %v307 = vsel %vm245, %v234, 0
        %v310 = vsel %vm245, %v235, 0
        %v313 = vsel %vm245, %v236, 0
        %v316 = vsel %vm245, %v237, 0
        %v319 = vsel %vm245, %v238, 0
        %v322 = vsel %vm245, %v239, 0
        %v325 = vsel %vm245, %v240, 0
        %v328 = vsel %vm245, %v241, 0
        %v331 = vsel %vm245, %v242, 0
        %v334 = vsel %vm245, %v243, 0
        %336 = vmatprep.subr.mxu0 0.0
        %337 = vmatpush1.msra.mxu0 %v244
        %338 = vmatprep.subr.mxu0 0.0
        %339 = vmatpush1.msra.mxu0 0.0
        %340 = vmatprep.subr.mxu0 0.0
        %341 = vmatpush1.msra.mxu0 0.0
        %342 = vmatprep.subr.mxu0 0.0
        %343 = vmatpush1.msra.mxu0 0.0
        %344 = vmatprep.subr.mxu0 0.0
        %345 = vmatpush1.msra.mxu0 0.0
        %346 = vmatprep.subr.mxu0 0.0
        %347 = vmatpush1.msra.mxu0 0.0
        %348 = vmatprep.subr.mxu0 0.0
        %349 = vmatpush1.msra.mxu0 0.0
        %350 = vmatprep.subr.mxu0 0.0
        %351 = vmatpush1.msra.mxu0 0.0
        %352 = vmatprep.subr.mxu0 0.0
        %353 = vmatpush1.msra.mxu0 0.0
        %354 = vmatprep.subr.mxu0 0.0
        %355 = vmatpush1.msra.mxu0 0.0
        %356 = vmatprep.subr.mxu0 0.0
        %357 = vmatpush1.msra.mxu0 0.0
        %358 = vmatprep.subr.mxu0 0.0
        %359 = vmatpush1.msra.mxu0 0.0
        %360 = vmatprep.subr.mxu0 0.0
        %361 = vmatpush1.msra.mxu0 0.0
        %362 = vmatprep.subr.mxu0 0.0
        %363 = vmatpush1.msra.mxu0 0.0
        %364 = vmatprep.subr.mxu0 0.0
        %365 = vmatpush1.msra.mxu0 0.0
        %366 = vmatprep.subr.mxu0 0.0
        %367 = vmatpush1.msra.mxu0 0.0
        %368 = vmatprep.subr.mxu0 0.0
        %369 = vmatpush1.msra.mxu0 0.0
        %370 = vmatprep.subr.mxu0 0.0
        %371 = vmatpush1.msra.mxu0 0.0
        %372 = vmatprep.subr.mxu0 0.0
        %373 = vmatpush1.msra.mxu0 0.0
        %374 = vmatprep.subr.mxu0 0.0
        %375 = vmatpush1.msra.mxu0 0.0
        %376 = vmatprep.subr.mxu0 0.0
        %377 = vmatpush1.msra.mxu0 0.0
        %378 = vmatprep.subr.mxu0 0.0
        %379 = vmatpush1.msra.mxu0 0.0
        %380 = vmatprep.subr.mxu0 0.0
        %381 = vmatpush1.msra.mxu0 0.0
        %382 = vmatprep.subr.mxu0 0.0
        %383 = vmatpush1.msra.mxu0 0.0
        %384 = vmatprep.subr.mxu0 0.0
        %385 = vmatpush1.msra.mxu0 0.0
        %386 = vmatprep.subr.mxu0 0.0
        %387 = vmatpush1.msra.mxu0 0.0
        %388 = vmatprep.subr.mxu0 0.0
        %389 = vmatpush1.msra.mxu0 0.0
        %390 = vmatprep.subr.mxu0 0.0
        %391 = vmatpush1.msra.mxu0 0.0
        %392 = vmatprep.subr.mxu0 0.0
        %393 = vmatpush1.msra.mxu0 0.0
        %394 = vmatprep.subr.mxu0 0.0
        %395 = vmatpush1.msra.mxu0 0.0
        %396 = vmatprep.subr.mxu0 0.0
        %397 = vmatpush1.msra.mxu0 0.0
        %398 = vmatprep.subr.mxu0 0.0
        %399 = vmatpush1.msra.mxu0 0.0
        %400 = vmatprep.mubr.f32.mxu0 0.0
        %401 = vmatmul.mubr.f32.gmra.mrb[0].mxu0 %v247
        %v402 = vpop.f32.mrb[0].mxu0
        %v403 = vadd.f32 0.0, %v402
        %v404 = vpop.f32.mrb[0].mxu0
        %405 = vmatprep.mubr.f32.mxu0 0.0
        %406 = vmatmul.mubr.f32.gmra.mrb[0].mxu0 %v250
        %v407 = vpop.f32.mrb[0].mxu0
        %v408 = vadd.f32 0.0, %v407
        %v409 = vpop.f32.mrb[0].mxu0
        %410 = vmatprep.mubr.f32.mxu0 0.0
        %411 = vmatmul.mubr.f32.gmra.mrb[0].mxu0 %v253
        %v412 = vpop.f32.mrb[0].mxu0
        %v413 = vadd.f32 0.0, %v412
        %v414 = vpop.f32.mrb[0].mxu0
        %415 = vmatprep.mubr.f32.mxu0 0.0
        %416 = vmatmul.mubr.f32.gmra.mrb[0].mxu0 %v256
        %v417 = vpop.f32.mrb[0].mxu0
        %v418 = vadd.f32 0.0, %v417
        %v419 = vpop.f32.mrb[0].mxu0
        %420 = vmatprep.mubr.f32.mxu0 0.0
        %421 = vmatmul.mubr.f32.gmra.mrb[0].mxu0 %v259
        %v422 = vpop.f32.mrb[0].mxu0
        %v423 = vadd.f32 0.0, %v422
        %v424 = vpop.f32.mrb[0].mxu0
        %425 = vmatprep.mubr.f32.mxu0 0.0
        %426 = vmatmul.mubr.f32.gmra.mrb[0].mxu0 %v262
        %v427 = vpop.f32.mrb[0].mxu0
        %v428 = vadd.f32 0.0, %v427
        %v429 = vpop.f32.mrb[0].mxu0
        %430 = vmatprep.mubr.f32.mxu0 0.0
        %431 = vmatmul.mubr.f32.gmra.mrb[0].mxu0 %v265
        %v432 = vpop.f32.mrb[0].mxu0
        %v433 = vadd.f32 0.0, %v432
        %v434 = vpop.f32.mrb[0].mxu0
        %435 = vmatprep.mubr.f32.mxu0 0.0
        %436 = vmatmul.mubr.f32.gmra.mrb[0].mxu0 %v268
        %v437 = vpop.f32.mrb[0].mxu0
        %v438 = vadd.f32 0.0, %v437
        %v439 = vpop.f32.mrb[0].mxu0
        %440 = vmatprep.mubr.f32.mxu0 0.0
        %441 = vmatmul.mubr.f32.gmra.mrb[0].mxu0 %v271
        %v442 = vpop.f32.mrb[0].mxu0
        %v443 = vadd.f32 0.0, %v442
        %v444 = vpop.f32.mrb[0].mxu0
        %445 = vmatprep.mubr.f32.mxu0 0.0
        %446 = vmatmul.mubr.f32.gmra.mrb[0].mxu0 %v274
        %v447 = vpop.f32.mrb[0].mxu0
        %v448 = vadd.f32 0.0, %v447
        %v449 = vpop.f32.mrb[0].mxu0
        %450 = vmatprep.mubr.f32.mxu0 0.0
        %451 = vmatmul.mubr.f32.gmra.mrb[0].mxu0 %v277
        %v452 = vpop.f32.mrb[0].mxu0
        %v453 = vadd.f32 0.0, %v452
        %v454 = vpop.f32.mrb[0].mxu0
        %455 = vmatprep.mubr.f32.mxu0 0.0
        %456 = vmatmul.mubr.f32.gmra.mrb[0].mxu0 %v280
        %v457 = vpop.f32.mrb[0].mxu0
        %v458 = vadd.f32 0.0, %v457
        %v459 = vpop.f32.mrb[0].mxu0
        %460 = vmatprep.mubr.f32.mxu0 0.0
        %461 = vmatmul.mubr.f32.gmra.mrb[0].mxu0 %v283
        %v462 = vpop.f32.mrb[0].mxu0
        %v463 = vadd.f32 0.0, %v462
        %v464 = vpop.f32.mrb[0].mxu0
        %465 = vmatprep.mubr.f32.mxu0 0.0
        %466 = vmatmul.mubr.f32.gmra.mrb[0].mxu0 %v286
        %v467 = vpop.f32.mrb[0].mxu0
        %v468 = vadd.f32 0.0, %v467
        %v469 = vpop.f32.mrb[0].mxu0
        %470 = vmatprep.mubr.f32.mxu0 0.0
        %471 = vmatmul.mubr.f32.gmra.mrb[0].mxu0 %v289
        %v472 = vpop.f32.mrb[0].mxu0
        %v473 = vadd.f32 0.0, %v472
        %v474 = vpop.f32.mrb[0].mxu0
        %475 = vmatprep.mubr.f32.mxu0 0.0
        %476 = vmatmul.mubr.f32.gmra.mrb[0].mxu0 %v292
        %v477 = vpop.f32.mrb[0].mxu0
        %v478 = vadd.f32 0.0, %v477
        %v479 = vpop.f32.mrb[0].mxu0
        %480 = vmatprep.mubr.f32.mxu0 0.0
        %481 = vmatmul.mubr.f32.gmra.mrb[0].mxu0 %v295
        %v482 = vpop.f32.mrb[0].mxu0
        %v483 = vadd.f32 0.0, %v482
        %v484 = vpop.f32.mrb[0].mxu0
        %485 = vmatprep.mubr.f32.mxu0 0.0
        %486 = vmatmul.mubr.f32.gmra.mrb[0].mxu0 %v298
        %v487 = vpop.f32.mrb[0].mxu0
        %v488 = vadd.f32 0.0, %v487
        %v489 = vpop.f32.mrb[0].mxu0
        %490 = vmatprep.mubr.f32.mxu0 0.0
        %491 = vmatmul.mubr.f32.gmra.mrb[0].mxu0 %v301
        %v492 = vpop.f32.mrb[0].mxu0
        %v493 = vadd.f32 0.0, %v492
        %v494 = vpop.f32.mrb[0].mxu0
        %495 = vmatprep.mubr.f32.mxu0 0.0
        %496 = vmatmul.mubr.f32.gmra.mrb[0].mxu0 %v304
        %v497 = vpop.f32.mrb[0].mxu0
        %v498 = vadd.f32 0.0, %v497
        %v499 = vpop.f32.mrb[0].mxu0
        %500 = vmatprep.mubr.f32.mxu0 0.0
        %501 = vmatmul.mubr.f32.gmra.mrb[0].mxu0 %v307
        %v502 = vpop.f32.mrb[0].mxu0
        %v503 = vadd.f32 0.0, %v502
        %v504 = vpop.f32.mrb[0].mxu0
        %505 = vmatprep.mubr.f32.mxu0 0.0
        %506 = vmatmul.mubr.f32.gmra.mrb[0].mxu0 %v310
        %v507 = vpop.f32.mrb[0].mxu0
        %v508 = vadd.f32 0.0, %v507
        %v509 = vpop.f32.mrb[0].mxu0
        %510 = vmatprep.mubr.f32.mxu0 0.0
        %511 = vmatmul.mubr.f32.gmra.mrb[0].mxu0 %v313
        %v512 = vpop.f32.mrb[0].mxu0
        %v513 = vadd.f32 0.0, %v512
        %v514 = vpop.f32.mrb[0].mxu0
        %515 = vmatprep.mubr.f32.mxu0 0.0
        %516 = vmatmul.mubr.f32.gmra.mrb[0].mxu0 %v316
        %v517 = vpop.f32.mrb[0].mxu0
        %v518 = vadd.f32 0.0, %v517
        %v519 = vpop.f32.mrb[0].mxu0
        %520 = vmatprep.mubr.f32.mxu0 0.0
        %521 = vmatmul.mubr.f32.gmra.mrb[0].mxu0 %v319
        %v522 = vpop.f32.mrb[0].mxu0
        %v523 = vadd.f32 0.0, %v522
        %v524 = vpop.f32.mrb[0].mxu0
        %525 = vmatprep.mubr.f32.mxu0 0.0
        %526 = vmatmul.mubr.f32.gmra.mrb[0].mxu0 %v322
        %v527 = vpop.f32.mrb[0].mxu0
        %v528 = vadd.f32 0.0, %v527
        %v529 = vpop.f32.mrb[0].mxu0
        %530 = vmatprep.mubr.f32.mxu0 0.0
        %531 = vmatmul.mubr.f32.gmra.mrb[0].mxu0 %v325
        %v532 = vpop.f32.mrb[0].mxu0
        %v533 = vadd.f32 0.0, %v532
        %v534 = vpop.f32.mrb[0].mxu0
        %535 = vmatprep.mubr.f32.mxu0 0.0
        %536 = vmatmul.mubr.f32.gmra.mrb[0].mxu0 %v328
        %v537 = vpop.f32.mrb[0].mxu0
        %v538 = vadd.f32 0.0, %v537
        %v539 = vpop.f32.mrb[0].mxu0
        %540 = vmatprep.mubr.f32.mxu0 0.0
        %541 = vmatmul.mubr.f32.gmra.mrb[0].mxu0 %v331
        %v542 = vpop.f32.mrb[0].mxu0
        %v543 = vadd.f32 0.0, %v542
        %v544 = vpop.f32.mrb[0].mxu0
        %545 = vmatprep.mubr.f32.mxu0 0.0
        %546 = vmatmul.mubr.f32.gmra.mrb[0].mxu0 %v334
        %v547 = vpop.f32.mrb[0].mxu0
        %v548 = vadd.f32 0.0, %v547
        %v549 = vpop.f32.mrb[0].mxu0
        %550 = vdwg.mxu0
        %v551 = vmax.f32 %v403, 0.0
        %v552 = vmax.f32 %v408, 0.0
        %v553 = vmax.f32 %v413, 0.0
        %v554 = vmax.f32 %v418, 0.0
        %v555 = vmax.f32 %v423, 0.0
        %v556 = vmax.f32 %v428, 0.0
        %v557 = vmax.f32 %v433, 0.0
        %v558 = vmax.f32 %v438, 0.0
        %v559 = vmax.f32 %v443, 0.0
        %v560 = vmax.f32 %v448, 0.0
        %v561 = vmax.f32 %v453, 0.0
        %v562 = vmax.f32 %v458, 0.0
        %v563 = vmax.f32 %v463, 0.0
        %v564 = vmax.f32 %v468, 0.0
        %v565 = vmax.f32 %v473, 0.0
        %v566 = vmax.f32 %v478, 0.0
        %v567 = vmax.f32 %v483, 0.0
        %v568 = vmax.f32 %v488, 0.0
        %v569 = vmax.f32 %v493, 0.0
        %v570 = vmax.f32 %v498, 0.0
        %v571 = vmax.f32 %v503, 0.0
        %v572 = vmax.f32 %v508, 0.0
        %v573 = vmax.f32 %v513, 0.0
        %v574 = vmax.f32 %v518, 0.0
        %v575 = vmax.f32 %v523, 0.0
        %v576 = vmax.f32 %v528, 0.0
        %v577 = vmax.f32 %v533, 0.0
        %v578 = vmax.f32 %v538, 0.0
        %v579 = vmax.f32 %v543, 0.0
        %v580 = vmax.f32 %v548, 0.0
        %v581 = vmin.f32 %v551, 6.0
        %v582 = vmin.f32 %v552, 6.0
        %v583 = vmin.f32 %v553, 6.0
        %v584 = vmin.f32 %v554, 6.0
        %v585 = vmin.f32 %v555, 6.0
        %v586 = vmin.f32 %v556, 6.0
        %v587 = vmin.f32 %v557, 6.0
        %v588 = vmin.f32 %v558, 6.0
        %v589 = vmin.f32 %v559, 6.0
        %v590 = vmin.f32 %v560, 6.0
        %v591 = vmin.f32 %v561, 6.0
        %v592 = vmin.f32 %v562, 6.0
        %v593 = vmin.f32 %v563, 6.0
        %v594 = vmin.f32 %v564, 6.0
        %v595 = vmin.f32 %v565, 6.0
        %v596 = vmin.f32 %v566, 6.0
        %v597 = vmin.f32 %v567, 6.0
        %v598 = vmin.f32 %v568, 6.0
        %v599 = vmin.f32 %v569, 6.0
        %v600 = vmin.f32 %v570, 6.0
        %v601 = vmin.f32 %v571, 6.0
        %v602 = vmin.f32 %v572, 6.0
        %v603 = vmin.f32 %v573, 6.0
        %v604 = vmin.f32 %v574, 6.0
        %v605 = vmin.f32 %v575, 6.0
        %v606 = vmin.f32 %v576, 6.0
        %v607 = vmin.f32 %v577, 6.0
        %v608 = vmin.f32 %v578, 6.0
        %v609 = vmin.f32 %v579, 6.0
        %v610 = vmin.f32 %v580, 6.0
        %v611 = vld [vmem:[%s2] sm:$0x7]
        %v612 = vld [vmem:[%s2 + $0x4] sm:$0x7]
        %v613 = vld [vmem:[%s2 + $0x8] sm:$0x7]
        %v614 = vlaneseq
        %v615 = vshrl.u32 %v614, 7
        %v616 = vsub.s32 0, %v615
        %v617 = vrot.slane %v611, %v616
        %v618 = vmul.f32 %v581, %v617
        %v619 = vmul.f32 %v582, %v617
        %v620 = vmul.f32 %v584, %v617
        %v621 = vmul.f32 %v585, %v617
        %v622 = vmul.f32 %v587, %v617
        %v623 = vmul.f32 %v588, %v617
        %v624 = vmul.f32 %v590, %v617
        %v625 = vmul.f32 %v591, %v617
        %v626 = vmul.f32 %v593, %v617
        %v627 = vmul.f32 %v594, %v617
        %v628 = vmul.f32 %v596, %v617
        %v629 = vmul.f32 %v597, %v617
        %v630 = vmul.f32 %v599, %v617
        %v631 = vmul.f32 %v600, %v617
        %v632 = vmul.f32 %v602, %v617
        %v633 = vmul.f32 %v603, %v617
        %v634 = vadd.f32 %v618, 0.0
        %v635 = vadd.f32 %v619, 0.0
        %v636 = vadd.f32 %v620, 0.0
        %v637 = vadd.f32 %v621, 0.0
        %v638 = vadd.f32 %v622, 0.0
        %v639 = vadd.f32 %v623, 0.0
        %v640 = vadd.f32 %v624, 0.0
        %v641 = vadd.f32 %v625, 0.0
        %v642 = vadd.f32 %v626, 0.0
        %v643 = vadd.f32 %v627, 0.0
        %v644 = vadd.f32 %v628, 0.0
        %v645 = vadd.f32 %v629, 0.0
        %v646 = vadd.f32 %v630, 0.0
        %v647 = vadd.f32 %v631, 0.0
        %v648 = vadd.f32 %v632, 0.0
        %v649 = vadd.f32 %v633, 0.0
        %v650 = vlaneseq
        %v651 = vshrl.u32 %v650, 7
        %v652 = vsub.s32 0, %v651
        %v653 = vrot.slane %v612, %v652
        %v654 = vmul.f32 %v584, %v653
        %v655 = vmul.f32 %v585, %v653
        %v656 = vmul.f32 %v587, %v653
        %v657 = vmul.f32 %v588, %v653
        %v658 = vmul.f32 %v590, %v653
        %v659 = vmul.f32 %v591, %v653
        %v660 = vmul.f32 %v593, %v653
        %v661 = vmul.f32 %v594, %v653
        %v662 = vmul.f32 %v596, %v653
        %v663 = vmul.f32 %v597, %v653
        %v664 = vmul.f32 %v599, %v653
        %v665 = vmul.f32 %v600, %v653
        %v666 = vmul.f32 %v602, %v653
        %v667 = vmul.f32 %v603, %v653
        %v668 = vmul.f32 %v605, %v653
        %v669 = vmul.f32 %v606, %v653
        %v670 = vadd.f32 %v634, %v654
        %v671 = vadd.f32 %v635, %v655
        %v672 = vadd.f32 %v636, %v656
        %v673 = vadd.f32 %v637, %v657
        %v674 = vadd.f32 %v638, %v658
        %v675 = vadd.f32 %v639, %v659
        %v676 = vadd.f32 %v640, %v660
        %v677 = vadd.f32 %v641, %v661
        %v678 = vadd.f32 %v642, %v662
        %v679 = vadd.f32 %v643, %v663
        %v680 = vadd.f32 %v644, %v664
        %v681 = vadd.f32 %v645, %v665
        %v682 = vadd.f32 %v646, %v666
        %v683 = vadd.f32 %v647, %v667
        %v684 = vadd.f32 %v648, %v668
        %v685 = vadd.f32 %v649, %v669
        %v686 = vlaneseq
        %v687 = vshrl.u32 %v686, 7
        %v688 = vsub.s32 0, %v687
        %v689 = vrot.slane %v613, %v688
        %v690 = vmul.f32 %v587, %v689
        %v691 = vmul.f32 %v588, %v689
        %v692 = vmul.f32 %v590, %v689
        %v693 = vmul.f32 %v591, %v689
        %v694 = vmul.f32 %v593, %v689
        %v695 = vmul.f32 %v594, %v689
        %v696 = vmul.f32 %v596, %v689
        %v697 = vmul.f32 %v597, %v689
        %v698 = vmul.f32 %v599, %v689
        %v699 = vmul.f32 %v600, %v689
        %v700 = vmul.f32 %v602, %v689
        %v701 = vmul.f32 %v603, %v689
        %v702 = vmul.f32 %v605, %v689
        %v703 = vmul.f32 %v606, %v689
        %v704 = vmul.f32 %v608, %v689
        %v705 = vmul.f32 %v609, %v689
        %v706 = vadd.f32 %v670, %v690
        %v707 = vadd.f32 %v671, %v691
        %v708 = vadd.f32 %v672, %v692
        %v709 = vadd.f32 %v673, %v693
        %v710 = vadd.f32 %v674, %v694
        %v711 = vadd.f32 %v675, %v695
        %v712 = vadd.f32 %v676, %v696
        %v713 = vadd.f32 %v677, %v697
        %v714 = vadd.f32 %v678, %v698
        %v715 = vadd.f32 %v679, %v699
        %v716 = vadd.f32 %v680, %v700
        %v717 = vadd.f32 %v681, %v701
        %v718 = vadd.f32 %v682, %v702
        %v719 = vadd.f32 %v683, %v703
        %v720 = vadd.f32 %v684, %v704
        %v721 = vadd.f32 %v685, %v705
        %v722 = vlaneseq
        %v723 = vshrl.u32 %v722, 7
        %v724 = vsub.s32 1, %v723
        %v725 = vrot.slane %v611, %v724
        %v726 = vmul.f32 %v581, %v725
        %v727 = vmul.f32 %v582, %v725
        %v728 = vmul.f32 %v583, %v725
        %v729 = vmul.f32 %v584, %v725
        %v730 = vmul.f32 %v585, %v725
        %v731 = vmul.f32 %v586, %v725
        %v732 = vmul.f32 %v587, %v725
        %v733 = vmul.f32 %v588, %v725
        %v734 = vmul.f32 %v589, %v725
        %v735 = vmul.f32 %v590, %v725
        %v736 = vmul.f32 %v591, %v725
        %v737 = vmul.f32 %v592, %v725
        %v738 = vmul.f32 %v593, %v725
        %v739 = vmul.f32 %v594, %v725
        %v740 = vmul.f32 %v595, %v725
        %v741 = vmul.f32 %v596, %v725
        %v742 = vmul.f32 %v597, %v725
        %v743 = vmul.f32 %v598, %v725
        %v744 = vmul.f32 %v599, %v725
        %v745 = vmul.f32 %v600, %v725
        %v746 = vmul.f32 %v601, %v725
        %v747 = vmul.f32 %v602, %v725
        %v748 = vmul.f32 %v603, %v725
        %v749 = vmul.f32 %v604, %v725
        %vm774 = vcmask 1046528
        %v775 = vrot.slane %v726, 1
        %v776 = vrot.slane %v727, 1
        %v777 = vsel %vm774, %v775, %v776
        %v778 = vrot.slane %v728, 1
        %v779 = vsel %vm774, %v776, %v778
        %v780 = vrot.slane %v729, 1
        %v781 = vrot.slane %v730, 1
        %v782 = vsel %vm774, %v780, %v781
        %v783 = vrot.slane %v731, 1
        %v784 = vsel %vm774, %v781, %v783
        %v785 = vrot.slane %v732, 1
        %v786 = vrot.slane %v733, 1
        %v787 = vsel %vm774, %v785, %v786
        %v788 = vrot.slane %v734, 1
        %v789 = vsel %vm774, %v786, %v788
        %v790 = vrot.slane %v735, 1
        %v791 = vrot.slane %v736, 1
        %v792 = vsel %vm774, %v790, %v791
        %v793 = vrot.slane %v737, 1
        %v794 = vsel %vm774, %v791, %v793
        %v795 = vrot.slane %v738, 1
        %v796 = vrot.slane %v739, 1
        %v797 = vsel %vm774, %v795, %v796
        %v798 = vrot.slane %v740, 1
        %v799 = vsel %vm774, %v796, %v798
        %v800 = vrot.slane %v741, 1
        %v801 = vrot.slane %v742, 1
        %v802 = vsel %vm774, %v800, %v801
        %v803 = vrot.slane %v743, 1
        %v804 = vsel %vm774, %v801, %v803
        %v805 = vrot.slane %v744, 1
        %v806 = vrot.slane %v745, 1
        %v807 = vsel %vm774, %v805, %v806
        %v808 = vrot.slane %v746, 1
        %v809 = vsel %vm774, %v806, %v808
        %v810 = vrot.slane %v747, 1
        %v811 = vrot.slane %v748, 1
        %v812 = vsel %vm774, %v810, %v811
        %v813 = vrot.slane %v749, 1
        %v814 = vsel %vm774, %v811, %v813
        %v831 = vadd.f32 %v706, %v777
        %v832 = vadd.f32 %v707, %v779
        %v833 = vadd.f32 %v708, %v782
        %v834 = vadd.f32 %v709, %v784
        %v835 = vadd.f32 %v710, %v787
        %v836 = vadd.f32 %v711, %v789
        %v837 = vadd.f32 %v712, %v792
        %v838 = vadd.f32 %v713, %v794
        %v839 = vadd.f32 %v714, %v797
        %v840 = vadd.f32 %v715, %v799
        %v841 = vadd.f32 %v716, %v802
        %v842 = vadd.f32 %v717, %v804
        %v843 = vadd.f32 %v718, %v807
        %v844 = vadd.f32 %v719, %v809
        %v845 = vadd.f32 %v720, %v812
        %v846 = vadd.f32 %v721, %v814
        %v847 = vlaneseq
        %v848 = vshrl.u32 %v847, 7
        %v849 = vsub.s32 1, %v848
        %v850 = vrot.slane %v612, %v849
        %v851 = vmul.f32 %v584, %v850
        %v852 = vmul.f32 %v585, %v850
        %v853 = vmul.f32 %v586, %v850
        %v854 = vmul.f32 %v587, %v850
        %v855 = vmul.f32 %v588, %v850
        %v856 = vmul.f32 %v589, %v850
        %v857 = vmul.f32 %v590, %v850
        %v858 = vmul.f32 %v591, %v850
        %v859 = vmul.f32 %v592, %v850
        %v860 = vmul.f32 %v593, %v850
        %v861 = vmul.f32 %v594, %v850
        %v862 = vmul.f32 %v595, %v850
        %v863 = vmul.f32 %v596, %v850
        %v864 = vmul.f32 %v597, %v850
        %v865 = vmul.f32 %v598, %v850
        %v866 = vmul.f32 %v599, %v850
        %v867 = vmul.f32 %v600, %v850
        %v868 = vmul.f32 %v601, %v850
        %v869 = vmul.f32 %v602, %v850
        %v870 = vmul.f32 %v603, %v850
        %v871 = vmul.f32 %v604, %v850
        %v872 = vmul.f32 %v605, %v850
        %v873 = vmul.f32 %v606, %v850
        %v874 = vmul.f32 %v607, %v850
        %v899 = vrot.slane %v851, 1
        %v900 = vrot.slane %v852, 1
        %v901 = vsel %vm774, %v899, %v900
        %v902 = vrot.slane %v853, 1
        %v903 = vsel %vm774, %v900, %v902
        %v904 = vrot.slane %v854, 1
        %v905 = vrot.slane %v855, 1
        %v906 = vsel %vm774, %v904, %v905
        %v907 = vrot.slane %v856, 1
        %v908 = vsel %vm774, %v905, %v907
        %v909 = vrot.slane %v857, 1
        %v910 = vrot.slane %v858, 1
        %v911 = vsel %vm774, %v909, %v910
        %v912 = vrot.slane %v859, 1
        %v913 = vsel %vm774, %v910, %v912
        %v914 = vrot.slane %v860, 1
        %v915 = vrot.slane %v861, 1
        %v916 = vsel %vm774, %v914, %v915
        %v917 = vrot.slane %v862, 1
        %v918 = vsel %vm774, %v915, %v917
        %v919 = vrot.slane %v863, 1
        %v920 = vrot.slane %v864, 1
        %v921 = vsel %vm774, %v919, %v920
        %v922 = vrot.slane %v865, 1
        %v923 = vsel %vm774, %v920, %v922
        %v924 = vrot.slane %v866, 1
        %v925 = vrot.slane %v867, 1
        %v926 = vsel %vm774, %v924, %v925
        %v927 = vrot.slane %v868, 1
        %v928 = vsel %vm774, %v925, %v927
        %v929 = vrot.slane %v869, 1
        %v930 = vrot.slane %v870, 1
        %v931 = vsel %vm774, %v929, %v930
        %v932 = vrot.slane %v871, 1
        %v933 = vsel %vm774, %v930, %v932
        %v934 = vrot.slane %v872, 1
        %v935 = vrot.slane %v873, 1
        %v936 = vsel %vm774, %v934, %v935
        %v937 = vrot.slane %v874, 1
        %v938 = vsel %vm774, %v935, %v937
        %v955 = vadd.f32 %v831, %v901
        %v956 = vadd.f32 %v832, %v903
        %v957 = vadd.f32 %v833, %v906
        %v958 = vadd.f32 %v834, %v908
        %v959 = vadd.f32 %v835, %v911
        %v960 = vadd.f32 %v836, %v913
        %v961 = vadd.f32 %v837, %v916
        %v962 = vadd.f32 %v838, %v918
        %v963 = vadd.f32 %v839, %v921
        %v964 = vadd.f32 %v840, %v923
        %v965 = vadd.f32 %v841, %v926
        %v966 = vadd.f32 %v842, %v928
        %v967 = vadd.f32 %v843, %v931
        %v968 = vadd.f32 %v844, %v933
        %v969 = vadd.f32 %v845, %v936
        %v970 = vadd.f32 %v846, %v938
        %v971 = vlaneseq
        %v972 = vshrl.u32 %v971, 7
        %v973 = vsub.s32 1, %v972
        %v974 = vrot.slane %v613, %v973
        %v975 = vmul.f32 %v587, %v974
        %v976 = vmul.f32 %v588, %v974
        %v977 = vmul.f32 %v589, %v974
        %v978 = vmul.f32 %v590, %v974
        %v979 = vmul.f32 %v591, %v974
        %v980 = vmul.f32 %v592, %v974
        %v981 = vmul.f32 %v593, %v974
        %v982 = vmul.f32 %v594, %v974
        %v983 = vmul.f32 %v595, %v974
        %v984 = vmul.f32 %v596, %v974
        %v985 = vmul.f32 %v597, %v974
        %v986 = vmul.f32 %v598, %v974
        %v987 = vmul.f32 %v599, %v974
        %v988 = vmul.f32 %v600, %v974
        %v989 = vmul.f32 %v601, %v974
        %v990 = vmul.f32 %v602, %v974
        %v991 = vmul.f32 %v603, %v974
        %v992 = vmul.f32 %v604, %v974
        %v993 = vmul.f32 %v605, %v974
        %v994 = vmul.f32 %v606, %v974
        %v995 = vmul.f32 %v607, %v974
        %v996 = vmul.f32 %v608, %v974
        %v997 = vmul.f32 %v609, %v974
        %v998 = vmul.f32 %v610, %v974
        %v1023 = vrot.slane %v975, 1
        %v1024 = vrot.slane %v976, 1
        %v1025 = vsel %vm774, %v1023, %v1024
        %v1026 = vrot.slane %v977, 1
        %v1027 = vsel %vm774, %v1024, %v1026
        %v1028 = vrot.slane %v978, 1
        %v1029 = vrot.slane %v979, 1
        %v1030 = vsel %vm774, %v1028, %v1029
        %v1031 = vrot.slane %v980, 1
        %v1032 = vsel %vm774, %v1029, %v1031
        %v1033 = vrot.slane %v981, 1
        %v1034 = vrot.slane %v982, 1
        %v1035 = vsel %vm774, %v1033, %v1034
        %v1036 = vrot.slane %v983, 1
        %v1037 = vsel %vm774, %v1034, %v1036
        %v1038 = vrot.slane %v984, 1
        %v1039 = vrot.slane %v985, 1
        %v1040 = vsel %vm774, %v1038, %v1039
        %v1041 = vrot.slane %v986, 1
        %v1042 = vsel %vm774, %v1039, %v1041
        %v1043 = vrot.slane %v987, 1
        %v1044 = vrot.slane %v988, 1
        %v1045 = vsel %vm774, %v1043, %v1044
        %v1046 = vrot.slane %v989, 1
        %v1047 = vsel %vm774, %v1044, %v1046
        %v1048 = vrot.slane %v990, 1
        %v1049 = vrot.slane %v991, 1
        %v1050 = vsel %vm774, %v1048, %v1049
        %v1051 = vrot.slane %v992, 1
        %v1052 = vsel %vm774, %v1049, %v1051
        %v1053 = vrot.slane %v993, 1
        %v1054 = vrot.slane %v994, 1
        %v1055 = vsel %vm774, %v1053, %v1054
        %v1056 = vrot.slane %v995, 1
        %v1057 = vsel %vm774, %v1054, %v1056
        %v1058 = vrot.slane %v996, 1
        %v1059 = vrot.slane %v997, 1
        %v1060 = vsel %vm774, %v1058, %v1059
        %v1061 = vrot.slane %v998, 1
        %v1062 = vsel %vm774, %v1059, %v1061
        %v1079 = vadd.f32 %v955, %v1025
        %v1080 = vadd.f32 %v956, %v1027
        %v1081 = vadd.f32 %v957, %v1030
        %v1082 = vadd.f32 %v958, %v1032
        %v1083 = vadd.f32 %v959, %v1035
        %v1084 = vadd.f32 %v960, %v1037
        %v1085 = vadd.f32 %v961, %v1040
        %v1086 = vadd.f32 %v962, %v1042
        %v1087 = vadd.f32 %v963, %v1045
        %v1088 = vadd.f32 %v964, %v1047
        %v1089 = vadd.f32 %v965, %v1050
        %v1090 = vadd.f32 %v966, %v1052
        %v1091 = vadd.f32 %v967, %v1055
        %v1092 = vadd.f32 %v968, %v1057
        %v1093 = vadd.f32 %v969, %v1060
        %v1094 = vadd.f32 %v970, %v1062
        %v1095 = vlaneseq
        %v1096 = vshrl.u32 %v1095, 7
        %v1097 = vsub.s32 2, %v1096
        %v1098 = vrot.slane %v611, %v1097
        %v1099 = vmul.f32 %v581, %v1098
        %v1100 = vmul.f32 %v582, %v1098
        %v1101 = vmul.f32 %v583, %v1098
        %v1102 = vmul.f32 %v584, %v1098
        %v1103 = vmul.f32 %v585, %v1098
        %v1104 = vmul.f32 %v586, %v1098
        %v1105 = vmul.f32 %v587, %v1098
        %v1106 = vmul.f32 %v588, %v1098
        %v1107 = vmul.f32 %v589, %v1098
        %v1108 = vmul.f32 %v590, %v1098
        %v1109 = vmul.f32 %v591, %v1098
        %v1110 = vmul.f32 %v592, %v1098
        %v1111 = vmul.f32 %v593, %v1098
        %v1112 = vmul.f32 %v594, %v1098
        %v1113 = vmul.f32 %v595, %v1098
        %v1114 = vmul.f32 %v596, %v1098
        %v1115 = vmul.f32 %v597, %v1098
        %v1116 = vmul.f32 %v598, %v1098
        %v1117 = vmul.f32 %v599, %v1098
        %v1118 = vmul.f32 %v600, %v1098
        %v1119 = vmul.f32 %v601, %v1098
        %v1120 = vmul.f32 %v602, %v1098
        %v1121 = vmul.f32 %v603, %v1098
        %v1122 = vmul.f32 %v604, %v1098
        %vm1147 = vcmask 1045504
        %v1148 = vrot.slane %v1099, 2
        %v1149 = vrot.slane %v1100, 2
        %v1150 = vsel %vm1147, %v1148, %v1149
        %v1151 = vrot.slane %v1101, 2
        %v1152 = vsel %vm1147, %v1149, %v1151
        %v1153 = vrot.slane %v1102, 2
        %v1154 = vrot.slane %v1103, 2
        %v1155 = vsel %vm1147, %v1153, %v1154
        %v1156 = vrot.slane %v1104, 2
        %v1157 = vsel %vm1147, %v1154, %v1156
        %v1158 = vrot.slane %v1105, 2
        %v1159 = vrot.slane %v1106, 2
        %v1160 = vsel %vm1147, %v1158, %v1159
        %v1161 = vrot.slane %v1107, 2
        %v1162 = vsel %vm1147, %v1159, %v1161
        %v1163 = vrot.slane %v1108, 2
        %v1164 = vrot.slane %v1109, 2
        %v1165 = vsel %vm1147, %v1163, %v1164
        %v1166 = vrot.slane %v1110, 2
        %v1167 = vsel %vm1147, %v1164, %v1166
        %v1168 = vrot.slane %v1111, 2
        %v1169 = vrot.slane %v1112, 2
        %v1170 = vsel %vm1147, %v1168, %v1169
        %v1171 = vrot.slane %v1113, 2
        %v1172 = vsel %vm1147, %v1169, %v1171
        %v1173 = vrot.slane %v1114, 2
        %v1174 = vrot.slane %v1115, 2
        %v1175 = vsel %vm1147, %v1173, %v1174
        %v1176 = vrot.slane %v1116, 2
        %v1177 = vsel %vm1147, %v1174, %v1176
        %v1178 = vrot.slane %v1117, 2
        %v1179 = vrot.slane %v1118, 2
        %v1180 = vsel %vm1147, %v1178, %v1179
        %v1181 = vrot.slane %v1119, 2
        %v1182 = vsel %vm1147, %v1179, %v1181
        %v1183 = vrot.slane %v1120, 2
        %v1184 = vrot.slane %v1121, 2
        %v1185 = vsel %vm1147, %v1183, %v1184
        %v1186 = vrot.slane %v1122, 2
        %v1187 = vsel %vm1147, %v1184, %v1186
        %v1204 = vadd.f32 %v1079, %v1150
        %v1205 = vadd.f32 %v1080, %v1152
        %v1206 = vadd.f32 %v1081, %v1155
        %v1207 = vadd.f32 %v1082, %v1157
        %v1208 = vadd.f32 %v1083, %v1160
        %v1209 = vadd.f32 %v1084, %v1162
        %v1210 = vadd.f32 %v1085, %v1165
        %v1211 = vadd.f32 %v1086, %v1167
        %v1212 = vadd.f32 %v1087, %v1170
        %v1213 = vadd.f32 %v1088, %v1172
        %v1214 = vadd.f32 %v1089, %v1175
        %v1215 = vadd.f32 %v1090, %v1177
        %v1216 = vadd.f32 %v1091, %v1180
        %v1217 = vadd.f32 %v1092, %v1182
        %v1218 = vadd.f32 %v1093, %v1185
        %v1219 = vadd.f32 %v1094, %v1187
        %v1220 = vlaneseq
        %v1221 = vshrl.u32 %v1220, 7
        %v1222 = vsub.s32 2, %v1221
        %v1223 = vrot.slane %v612, %v1222
        %v1224 = vmul.f32 %v584, %v1223
        %v1225 = vmul.f32 %v585, %v1223
        %v1226 = vmul.f32 %v586, %v1223
        %v1227 = vmul.f32 %v587, %v1223
        %v1228 = vmul.f32 %v588, %v1223
        %v1229 = vmul.f32 %v589, %v1223
        %v1230 = vmul.f32 %v590, %v1223
        %v1231 = vmul.f32 %v591, %v1223
        %v1232 = vmul.f32 %v592, %v1223
        %v1233 = vmul.f32 %v593, %v1223
        %v1234 = vmul.f32 %v594, %v1223
        %v1235 = vmul.f32 %v595, %v1223
        %v1236 = vmul.f32 %v596, %v1223
        %v1237 = vmul.f32 %v597, %v1223
        %v1238 = vmul.f32 %v598, %v1223
        %v1239 = vmul.f32 %v599, %v1223
        %v1240 = vmul.f32 %v600, %v1223
        %v1241 = vmul.f32 %v601, %v1223
        %v1242 = vmul.f32 %v602, %v1223
        %v1243 = vmul.f32 %v603, %v1223
        %v1244 = vmul.f32 %v604, %v1223
        %v1245 = vmul.f32 %v605, %v1223
        %v1246 = vmul.f32 %v606, %v1223
        %v1247 = vmul.f32 %v607, %v1223
        %v1272 = vrot.slane %v1224, 2
        %v1273 = vrot.slane %v1225, 2
        %v1274 = vsel %vm1147, %v1272, %v1273
        %v1275 = vrot.slane %v1226, 2
        %v1276 = vsel %vm1147, %v1273, %v1275
        %v1277 = vrot.slane %v1227, 2
        %v1278 = vrot.slane %v1228, 2
        %v1279 = vsel %vm1147, %v1277, %v1278
        %v1280 = vrot.slane %v1229, 2
        %v1281 = vsel %vm1147, %v1278, %v1280
        %v1282 = vrot.slane %v1230, 2
        %v1283 = vrot.slane %v1231, 2
        %v1284 = vsel %vm1147, %v1282, %v1283
        %v1285 = vrot.slane %v1232, 2
        %v1286 = vsel %vm1147, %v1283, %v1285
        %v1287 = vrot.slane %v1233, 2
        %v1288 = vrot.slane %v1234, 2
        %v1289 = vsel %vm1147, %v1287, %v1288
        %v1290 = vrot.slane %v1235, 2
        %v1291 = vsel %vm1147, %v1288, %v1290
        %v1292 = vrot.slane %v1236, 2
        %v1293 = vrot.slane %v1237, 2
        %v1294 = vsel %vm1147, %v1292, %v1293
        %v1295 = vrot.slane %v1238, 2
        %v1296 = vsel %vm1147, %v1293, %v1295
        %v1297 = vrot.slane %v1239, 2
        %v1298 = vrot.slane %v1240, 2
        %v1299 = vsel %vm1147, %v1297, %v1298
        %v1300 = vrot.slane %v1241, 2
        %v1301 = vsel %vm1147, %v1298, %v1300
        %v1302 = vrot.slane %v1242, 2
        %v1303 = vrot.slane %v1243, 2
        %v1304 = vsel %vm1147, %v1302, %v1303
        %v1305 = vrot.slane %v1244, 2
        %v1306 = vsel %vm1147, %v1303, %v1305
        %v1307 = vrot.slane %v1245, 2
        %v1308 = vrot.slane %v1246, 2
        %v1309 = vsel %vm1147, %v1307, %v1308
        %v1310 = vrot.slane %v1247, 2
        %v1311 = vsel %vm1147, %v1308, %v1310
        %v1328 = vadd.f32 %v1204, %v1274
        %v1329 = vadd.f32 %v1205, %v1276
        %v1330 = vadd.f32 %v1206, %v1279
        %v1331 = vadd.f32 %v1207, %v1281
        %v1332 = vadd.f32 %v1208, %v1284
        %v1333 = vadd.f32 %v1209, %v1286
        %v1334 = vadd.f32 %v1210, %v1289
        %v1335 = vadd.f32 %v1211, %v1291
        %v1336 = vadd.f32 %v1212, %v1294
        %v1337 = vadd.f32 %v1213, %v1296
        %v1338 = vadd.f32 %v1214, %v1299
        %v1339 = vadd.f32 %v1215, %v1301
        %v1340 = vadd.f32 %v1216, %v1304
        %v1341 = vadd.f32 %v1217, %v1306
        %v1342 = vadd.f32 %v1218, %v1309
        %v1343 = vadd.f32 %v1219, %v1311
        %v1344 = vlaneseq
        %v1345 = vshrl.u32 %v1344, 7
        %v1346 = vsub.s32 2, %v1345
        %v1347 = vrot.slane %v613, %v1346
        %v1348 = vmul.f32 %v587, %v1347
        %v1349 = vmul.f32 %v588, %v1347
        %v1350 = vmul.f32 %v589, %v1347
        %v1351 = vmul.f32 %v590, %v1347
        %v1352 = vmul.f32 %v591, %v1347
        %v1353 = vmul.f32 %v592, %v1347
        %v1354 = vmul.f32 %v593, %v1347
        %v1355 = vmul.f32 %v594, %v1347
        %v1356 = vmul.f32 %v595, %v1347
        %v1357 = vmul.f32 %v596, %v1347
        %v1358 = vmul.f32 %v597, %v1347
        %v1359 = vmul.f32 %v598, %v1347
        %v1360 = vmul.f32 %v599, %v1347
        %v1361 = vmul.f32 %v600, %v1347
        %v1362 = vmul.f32 %v601, %v1347
        %v1363 = vmul.f32 %v602, %v1347
        %v1364 = vmul.f32 %v603, %v1347
        %v1365 = vmul.f32 %v604, %v1347
        %v1366 = vmul.f32 %v605, %v1347
        %v1367 = vmul.f32 %v606, %v1347
        %v1368 = vmul.f32 %v607, %v1347
        %v1369 = vmul.f32 %v608, %v1347
        %v1370 = vmul.f32 %v609, %v1347
        %v1371 = vmul.f32 %v610, %v1347
        %v1396 = vrot.slane %v1348, 2
        %v1397 = vrot.slane %v1349, 2
        %v1398 = vsel %vm1147, %v1396, %v1397
        %v1399 = vrot.slane %v1350, 2
        %v1400 = vsel %vm1147, %v1397, %v1399
        %v1401 = vrot.slane %v1351, 2
        %v1402 = vrot.slane %v1352, 2
        %v1403 = vsel %vm1147, %v1401, %v1402
        %v1404 = vrot.slane %v1353, 2
        %v1405 = vsel %vm1147, %v1402, %v1404
        %v1406 = vrot.slane %v1354, 2
        %v1407 = vrot.slane %v1355, 2
        %v1408 = vsel %vm1147, %v1406, %v1407
        %v1409 = vrot.slane %v1356, 2
        %v1410 = vsel %vm1147, %v1407, %v1409
        %v1411 = vrot.slane %v1357, 2
        %v1412 = vrot.slane %v1358, 2
        %v1413 = vsel %vm1147, %v1411, %v1412
        %v1414 = vrot.slane %v1359, 2
        %v1415 = vsel %vm1147, %v1412, %v1414
        %v1416 = vrot.slane %v1360, 2
        %v1417 = vrot.slane %v1361, 2
        %v1418 = vsel %vm1147, %v1416, %v1417
        %v1419 = vrot.slane %v1362, 2
        %v1420 = vsel %vm1147, %v1417, %v1419
        %v1421 = vrot.slane %v1363, 2
        %v1422 = vrot.slane %v1364, 2
        %v1423 = vsel %vm1147, %v1421, %v1422
        %v1424 = vrot.slane %v1365, 2
        %v1425 = vsel %vm1147, %v1422, %v1424
        %v1426 = vrot.slane %v1366, 2
        %v1427 = vrot.slane %v1367, 2
        %v1428 = vsel %vm1147, %v1426, %v1427
        %v1429 = vrot.slane %v1368, 2
        %v1430 = vsel %vm1147, %v1427, %v1429
        %v1431 = vrot.slane %v1369, 2
        %v1432 = vrot.slane %v1370, 2
        %v1433 = vsel %vm1147, %v1431, %v1432
        %v1434 = vrot.slane %v1371, 2
        %v1435 = vsel %vm1147, %v1432, %v1434
        %v1452 = vadd.f32 %v1328, %v1398
        %v1453 = vadd.f32 %v1329, %v1400
        %v1454 = vadd.f32 %v1330, %v1403
        %v1455 = vadd.f32 %v1331, %v1405
        %v1456 = vadd.f32 %v1332, %v1408
        %v1457 = vadd.f32 %v1333, %v1410
        %v1458 = vadd.f32 %v1334, %v1413
        %v1459 = vadd.f32 %v1335, %v1415
        %v1460 = vadd.f32 %v1336, %v1418
        %v1461 = vadd.f32 %v1337, %v1420
        %v1462 = vadd.f32 %v1338, %v1423
        %v1463 = vadd.f32 %v1339, %v1425
        %v1464 = vadd.f32 %v1340, %v1428
        %v1465 = vadd.f32 %v1341, %v1430
        %v1466 = vadd.f32 %v1342, %v1433
        %v1467 = vadd.f32 %v1343, %v1435
        %v1468 = vmax.f32 %v1452, 0.0
        %v1469 = vmax.f32 %v1453, 0.0
        %v1470 = vmax.f32 %v1454, 0.0
        %v1471 = vmax.f32 %v1455, 0.0
        %v1472 = vmax.f32 %v1456, 0.0
        %v1473 = vmax.f32 %v1457, 0.0
        %v1474 = vmax.f32 %v1458, 0.0
        %v1475 = vmax.f32 %v1459, 0.0
        %v1476 = vmax.f32 %v1460, 0.0
        %v1477 = vmax.f32 %v1461, 0.0
        %v1478 = vmax.f32 %v1462, 0.0
        %v1479 = vmax.f32 %v1463, 0.0
        %v1480 = vmax.f32 %v1464, 0.0
        %v1481 = vmax.f32 %v1465, 0.0
        %v1482 = vmax.f32 %v1466, 0.0
        %v1483 = vmax.f32 %v1467, 0.0
        %v1484 = vmin.f32 %v1468, 6.0
        %v1485 = vmin.f32 %v1469, 6.0
        %v1486 = vmin.f32 %v1470, 6.0
        %v1487 = vmin.f32 %v1471, 6.0
        %v1488 = vmin.f32 %v1472, 6.0
        %v1489 = vmin.f32 %v1473, 6.0
        %v1490 = vmin.f32 %v1474, 6.0
        %v1491 = vmin.f32 %v1475, 6.0
        %v1492 = vmin.f32 %v1476, 6.0
        %v1493 = vmin.f32 %v1477, 6.0
        %v1494 = vmin.f32 %v1478, 6.0
        %v1495 = vmin.f32 %v1479, 6.0
        %v1496 = vmin.f32 %v1480, 6.0
        %v1497 = vmin.f32 %v1481, 6.0
        %v1498 = vmin.f32 %v1482, 6.0
        %v1499 = vmin.f32 %v1483, 6.0
        %v1500 = vld [vmem:[%s3] sm:$0xff]
        %v1501 = vld [vmem:[%s3 + $0x8] sm:$0xff]
        %vm1502 = vcmask 130048
        %v1504 = vsel %vm1502, %v1484, 0
        %v1507 = vsel %vm1502, %v1485, 0
        %v1510 = vsel %vm1502, %v1486, 0
        %v1513 = vsel %vm1502, %v1487, 0
        %v1516 = vsel %vm1502, %v1488, 0
        %v1519 = vsel %vm1502, %v1489, 0
        %v1522 = vsel %vm1502, %v1490, 0
        %v1525 = vsel %vm1502, %v1491, 0
        %v1528 = vsel %vm1502, %v1492, 0
        %v1531 = vsel %vm1502, %v1493, 0
        %v1534 = vsel %vm1502, %v1494, 0
        %v1537 = vsel %vm1502, %v1495, 0
        %v1540 = vsel %vm1502, %v1496, 0
        %v1543 = vsel %vm1502, %v1497, 0
        %v1546 = vsel %vm1502, %v1498, 0
        %v1549 = vsel %vm1502, %v1499, 0
        %1551 = vmatprep.subr.mxu0 0.0
        %1552 = vmatpush1.msra.mxu0 %v1500
        %1553 = vmatprep.subr.mxu0 0.0
        %1554 = vmatpush1.msra.mxu0 %v1501
        %1555 = vmatprep.subr.mxu0 0.0
        %1556 = vmatpush1.msra.mxu0 0.0
        %1557 = vmatprep.subr.mxu0 0.0
        %1558 = vmatpush1.msra.mxu0 0.0
        %1559 = vmatprep.subr.mxu0 0.0
        %1560 = vmatpush1.msra.mxu0 0.0
        %1561 = vmatprep.subr.mxu0 0.0
        %1562 = vmatpush1.msra.mxu0 0.0
        %1563 = vmatprep.subr.mxu0 0.0
        %1564 = vmatpush1.msra.mxu0 0.0
        %1565 = vmatprep.subr.mxu0 0.0
        %1566 = vmatpush1.msra.mxu0 0.0
        %1567 = vmatprep.subr.mxu0 0.0
        %1568 = vmatpush1.msra.mxu0 0.0
        %1569 = vmatprep.subr.mxu0 0.0
        %1570 = vmatpush1.msra.mxu0 0.0
        %1571 = vmatprep.subr.mxu0 0.0
        %1572 = vmatpush1.msra.mxu0 0.0
        %1573 = vmatprep.subr.mxu0 0.0
        %1574 = vmatpush1.msra.mxu0 0.0
        %1575 = vmatprep.subr.mxu0 0.0
        %1576 = vmatpush1.msra.mxu0 0.0
        %1577 = vmatprep.subr.mxu0 0.0
        %1578 = vmatpush1.msra.mxu0 0.0
        %1579 = vmatprep.subr.mxu0 0.0
        %1580 = vmatpush1.msra.mxu0 0.0
        %1581 = vmatprep.subr.mxu0 0.0
        %1582 = vmatpush1.msra.mxu0 0.0
        %1583 = vmatprep.subr.mxu0 0.0
        %1584 = vmatpush1.msra.mxu0 0.0
        %1585 = vmatprep.subr.mxu0 0.0
        %1586 = vmatpush1.msra.mxu0 0.0
        %1587 = vmatprep.subr.mxu0 0.0
        %1588 = vmatpush1.msra.mxu0 0.0
        %1589 = vmatprep.subr.mxu0 0.0
        %1590 = vmatpush1.msra.mxu0 0.0
        %1591 = vmatprep.subr.mxu0 0.0
        %1592 = vmatpush1.msra.mxu0 0.0
        %1593 = vmatprep.subr.mxu0 0.0
        %1594 = vmatpush1.msra.mxu0 0.0
        %1595 = vmatprep.subr.mxu0 0.0
        %1596 = vmatpush1.msra.mxu0 0.0
        %1597 = vmatprep.subr.mxu0 0.0
        %1598 = vmatpush1.msra.mxu0 0.0
        %1599 = vmatprep.subr.mxu0 0.0
        %1600 = vmatpush1.msra.mxu0 0.0
        %1601 = vmatprep.subr.mxu0 0.0
        %1602 = vmatpush1.msra.mxu0 0.0
        %1603 = vmatprep.subr.mxu0 0.0
        %1604 = vmatpush1.msra.mxu0 0.0
        %1605 = vmatprep.subr.mxu0 0.0
        %1606 = vmatpush1.msra.mxu0 0.0
        %1607 = vmatprep.subr.mxu0 0.0
        %1608 = vmatpush1.msra.mxu0 0.0
        %1609 = vmatprep.subr.mxu0 0.0
        %1610 = vmatpush1.msra.mxu0 0.0
        %1611 = vmatprep.subr.mxu0 0.0
        %1612 = vmatpush1.msra.mxu0 0.0
        %1613 = vmatprep.subr.mxu0 0.0
        %1614 = vmatpush1.msra.mxu0 0.0
        %1615 = vmatprep.mubr.f32.mxu0 0.0
        %1616 = vmatmul.mubr.f32.gmra.mrb[0].mxu0 %v1504
        %v1617 = vpop.f32.mrb[0].mxu0
        %v1618 = vadd.f32 0.0, %v1617
        %v1619 = vpop.f32.mrb[0].mxu0
        %1620 = vmatprep.mubr.f32.mxu0 0.0
        %1621 = vmatmul.mubr.f32.gmra.mrb[0].mxu0 %v1507
        %v1622 = vpop.f32.mrb[0].mxu0
        %v1623 = vadd.f32 0.0, %v1622
        %v1624 = vpop.f32.mrb[0].mxu0
        %1625 = vmatprep.mubr.f32.mxu0 0.0
        %1626 = vmatmul.mubr.f32.gmra.mrb[0].mxu0 %v1510
        %v1627 = vpop.f32.mrb[0].mxu0
        %v1628 = vadd.f32 0.0, %v1627
        %v1629 = vpop.f32.mrb[0].mxu0
        %1630 = vmatprep.mubr.f32.mxu0 0.0
        %1631 = vmatmul.mubr.f32.gmra.mrb[0].mxu0 %v1513
        %v1632 = vpop.f32.mrb[0].mxu0
        %v1633 = vadd.f32 0.0, %v1632
        %v1634 = vpop.f32.mrb[0].mxu0
        %1635 = vmatprep.mubr.f32.mxu0 0.0
        %1636 = vmatmul.mubr.f32.gmra.mrb[0].mxu0 %v1516
        %v1637 = vpop.f32.mrb[0].mxu0
        %v1638 = vadd.f32 0.0, %v1637
        %v1639 = vpop.f32.mrb[0].mxu0
        %1640 = vmatprep.mubr.f32.mxu0 0.0
        %1641 = vmatmul.mubr.f32.gmra.mrb[0].mxu0 %v1519
        %v1642 = vpop.f32.mrb[0].mxu0
        %v1643 = vadd.f32 0.0, %v1642
        %v1644 = vpop.f32.mrb[0].mxu0
        %1645 = vmatprep.mubr.f32.mxu0 0.0
        %1646 = vmatmul.mubr.f32.gmra.mrb[0].mxu0 %v1522
        %v1647 = vpop.f32.mrb[0].mxu0
        %v1648 = vadd.f32 0.0, %v1647
        %v1649 = vpop.f32.mrb[0].mxu0
        %1650 = vmatprep.mubr.f32.mxu0 0.0
        %1651 = vmatmul.mubr.f32.gmra.mrb[0].mxu0 %v1525
        %v1652 = vpop.f32.mrb[0].mxu0
        %v1653 = vadd.f32 0.0, %v1652
        %v1654 = vpop.f32.mrb[0].mxu0
        %1655 = vmatprep.mubr.f32.mxu0 0.0
        %1656 = vmatmul.mubr.f32.gmra.mrb[0].mxu0 %v1528
        %v1657 = vpop.f32.mrb[0].mxu0
        %v1658 = vadd.f32 0.0, %v1657
        %v1659 = vpop.f32.mrb[0].mxu0
        %1660 = vmatprep.mubr.f32.mxu0 0.0
        %1661 = vmatmul.mubr.f32.gmra.mrb[0].mxu0 %v1531
        %v1662 = vpop.f32.mrb[0].mxu0
        %v1663 = vadd.f32 0.0, %v1662
        %v1664 = vpop.f32.mrb[0].mxu0
        %1665 = vmatprep.mubr.f32.mxu0 0.0
        %1666 = vmatmul.mubr.f32.gmra.mrb[0].mxu0 %v1534
        %v1667 = vpop.f32.mrb[0].mxu0
        %v1668 = vadd.f32 0.0, %v1667
        %v1669 = vpop.f32.mrb[0].mxu0
        %1670 = vmatprep.mubr.f32.mxu0 0.0
        %1671 = vmatmul.mubr.f32.gmra.mrb[0].mxu0 %v1537
        %v1672 = vpop.f32.mrb[0].mxu0
        %v1673 = vadd.f32 0.0, %v1672
        %v1674 = vpop.f32.mrb[0].mxu0
        %1675 = vmatprep.mubr.f32.mxu0 0.0
        %1676 = vmatmul.mubr.f32.gmra.mrb[0].mxu0 %v1540
        %v1677 = vpop.f32.mrb[0].mxu0
        %v1678 = vadd.f32 0.0, %v1677
        %v1679 = vpop.f32.mrb[0].mxu0
        %1680 = vmatprep.mubr.f32.mxu0 0.0
        %1681 = vmatmul.mubr.f32.gmra.mrb[0].mxu0 %v1543
        %v1682 = vpop.f32.mrb[0].mxu0
        %v1683 = vadd.f32 0.0, %v1682
        %v1684 = vpop.f32.mrb[0].mxu0
        %1685 = vmatprep.mubr.f32.mxu0 0.0
        %1686 = vmatmul.mubr.f32.gmra.mrb[0].mxu0 %v1546
        %v1687 = vpop.f32.mrb[0].mxu0
        %v1688 = vadd.f32 0.0, %v1687
        %v1689 = vpop.f32.mrb[0].mxu0
        %1690 = vmatprep.mubr.f32.mxu0 0.0
        %1691 = vmatmul.mubr.f32.gmra.mrb[0].mxu0 %v1549
        %v1692 = vpop.f32.mrb[0].mxu0
        %v1693 = vadd.f32 0.0, %v1692
        %v1694 = vpop.f32.mrb[0].mxu0
        %1695 = vdwg.mxu0
        %1696 = vst.msk [vmem:[%s204] sm:$0xff] %vm1502, %v1618
        %1697 = vst.msk [vmem:[%s204 + $0x8] sm:$0xff] %vm1502, %v1623
        %1698 = vst.msk [vmem:[%s204 + $0x10] sm:$0xff] %vm1502, %v1628
        %1699 = vst.msk [vmem:[%s204 + $0x18] sm:$0xff] %vm1502, %v1633
        %1700 = vst.msk [vmem:[%s204 + $0x20] sm:$0xff] %vm1502, %v1638
        %1701 = vst.msk [vmem:[%s204 + $0x28] sm:$0xff] %vm1502, %v1643
        %1702 = vst.msk [vmem:[%s204 + $0x30] sm:$0xff] %vm1502, %v1648
        %1703 = vst.msk [vmem:[%s204 + $0x38] sm:$0xff] %vm1502, %v1653
        %1704 = vst.msk [vmem:[%s204 + $0x40] sm:$0xff] %vm1502, %v1658
        %1705 = vst.msk [vmem:[%s204 + $0x48] sm:$0xff] %vm1502, %v1663
        %1706 = vst.msk [vmem:[%s204 + $0x50] sm:$0xff] %vm1502, %v1668
        %1707 = vst.msk [vmem:[%s204 + $0x58] sm:$0xff] %vm1502, %v1673
        %1708 = vst.msk [vmem:[%s204 + $0x60] sm:$0xff] %vm1502, %v1678
        %1709 = vst.msk [vmem:[%s204 + $0x68] sm:$0xff] %vm1502, %v1683
        %1710 = vst.msk [vmem:[%s204 + $0x70] sm:$0xff] %vm1502, %v1688
        %1711 = vst.msk [vmem:[%s204 + $0x78] sm:$0xff] %vm1502, %v1693
        %s1712 = sand.u32 %s129, 1
        %s1713 = scalar_lea.sflag [#allocation3], %s1712
        %s1714 = sand.u32 %s129, 1
        %s1715 = smul.addr %s1714, 128
        %s1716 = scalar_lea.vmem [#allocation2], %s1715
        // Predicated region
        $region37: #{tpu_custom_call.1} parent=35 // pred_check
          %p1717 = pneg %p139
        $region38: #{tpu_custom_call.1} parent=35 // pred_check_branch
          %1719 = sbr.rel (%p1717) target = $region40
        $region39: #{tpu_custom_call.1} parent=35 // pred_region
          %s1720 = smul.u32 8, %s23
          %s1722 = ssub.s32 2048, 2048
          %1723 = vsyncadd %s1713, %s1722
          %s1724 = smul.addr %s1720, 2
          %s1725 = smul.addr %s22, 32
          %s1726 = sadd.s32 %s1724, %s1725
          %s1727 = smul.addr %s1726, 128
          %s1728 = scalar_lea.hbm %s4, %s1727
          %s1729 = sshll.u32 %s1716, 4
          %s1730 = int_to_ptr.vmem [resolvable:$true] %s1729
          %1735 = dma.vmem_to_hbm [thread:$0]  %s1730, 2048, %s1728, %s1713, 128, 128, 8
        $region40: #{tpu_custom_call.1} parent=35 // pred_fallthru
          _
      $region36: #{tpu_custom_call.1} parent=5 // pred_fallthru
        _
      %p1736 = scmp.le.s32.totalorder 2, %s13
      // Predicated region
      $region41: #{tpu_custom_call.1} parent=5 // pred_check
        %p1737 = pneg %p1736
      $region42: #{tpu_custom_call.1} parent=5 // pred_check_branch
        %1739 = sbr.rel (%p1737) target = $region44
      $region43: #{tpu_custom_call.1} parent=5 // pred_region
        %s1740 = ssub.s32 %s13, 2
        // Predicated region
        $region45: #{tpu_custom_call.1} parent=43 // pred_check
          %p1741 = pneg %p145
        $region46: #{tpu_custom_call.1} parent=43 // pred_check_branch
          %1743 = sbr.rel (%p1741) target = $region48
        $region47: #{tpu_custom_call.1} parent=43 // pred_region
          %s1744 = sand.u32 %s130, 1
          %s1745 = scalar_lea.sflag [#allocation3], %s1744
          %s1746 = sand.u32 %s130, 1
          %s1747 = smul.addr %s1746, 128
          %s1748 = scalar_lea.vmem [#allocation2], %s1747
          %1749 = dma.done %s1745, 2048
        $region48: #{tpu_custom_call.1} parent=43 // pred_fallthru
          _
      $region44: #{tpu_custom_call.1} parent=5 // pred_fallthru
        _
    $region6: #{tpu_custom_call.1} parent=1 // loop_footer
      %s17 = sadd.s32 1, %s13
    $region7: #{tpu_custom_call.1} parent=1 // loop_footer_branch
      %12 = sbr.rel target = $region3
    $region8: #{tpu_custom_call.1} parent=1 // loop_exit
      _
    %1750 = vsyncpa [#allocation3], 1
    %s1751 = scalar_lea.sflag [#allocation3], 1
    %1752 = vsyncpa %s1751, 1

</llo_original>
